<compile_context>
chip_gen: v5e
topology: v5e:2x2
jax: 0.10.0
libtpu: 0.0.40
codegen_flags: <defaults>
</compile_context>

<pallas_src>
import numpy as np
import jax
import jax.numpy as jnp
from jax.experimental import pallas as pl
from jax.experimental.pallas import tpu as pltpu

# ----------------------------- synthetic BERT config -----------------------
VOCAB = 128
HIDDEN = 32
N_HEADS = 2
HEAD_DIM = HIDDEN // N_HEADS
FFN = 64
N_LAYERS = 2
MAX_POS = 64
SEP_TOKEN_ID = 102          # must be < VOCAB
LN_EPS = 1e-12
LANE = 128                  # TPU lane width


# ----------------------------- shared math helpers --------------------------
def _layer_norm(x, g, b):
    mu = jnp.mean(x, axis=-1, keepdims=True)
    var = jnp.mean(jnp.square(x - mu), axis=-1, keepdims=True)
    return (x - mu) * jax.lax.rsqrt(var + LN_EPS) * g + b


def _gelu(x):
    # tanh approximation of GELU (BERT's exact-erf GELU differs by <1e-3).
    c = np.float32(np.sqrt(2.0 / np.pi))
    return 0.5 * x * (1.0 + jnp.tanh(c * (x + 0.044715 * x * x * x)))


# ----------------------------- fused, layer-streamed kernel ------------------
def _make_layer_kernel(batch, seq, pack, pack_rows):
    """One grid step == one transformer layer (plus emb-LN init / packed store)."""
    scale = np.float32(1.0 / np.sqrt(HEAD_DIM))

    def kernel(x_ref, bias_ref, sel_ref, eg_ref, eb_ref,
               wq_ref, bq_ref, wk_ref, bk_ref, wv_ref, bv_ref,
               wo_ref, bo_ref, g1_ref, be1_ref,
               w1_ref, bf1_ref, w2_ref, bf2_ref, g2_ref, be2_ref,
               o_ref, xs_ref):
        l = pl.program_id(0)

        # Embedding LayerNorm once, into the resident activation scratch.
        @pl.when(l == 0)
        def _():
            xs_ref[...] = _layer_norm(x_ref[...].astype(jnp.float32),
                                      eg_ref[...], eb_ref[...])

        x = xs_ref[...]                                      # (B*S, H) resident

        # ------------------- attention -------------------------------------
        # Per-head Q/K/V from wrapper-side pre-split weights (no column slices
        # of a (B*S, H) tensor), stacked into one (NH*B, S, HD) leading batch.
        def split_heads(w_ref, b_ref):
            parts = []
            for h in range(N_HEADS):
                ph = jnp.dot(x, w_ref[h],
                             preferred_element_type=jnp.float32) + b_ref[h]
                for b in range(batch):
                    parts.append(ph[b * seq:(b + 1) * seq, :])   # (S, HD)
            return jnp.stack(parts, axis=0)                      # (NH*B, S, HD)

        qh = split_heads(wq_ref, bq_ref)
        kh = split_heads(wk_ref, bk_ref)
        vh = split_heads(wv_ref, bv_ref)

        # One batched contraction over (head, batch); K consumed untransposed.
        s = jnp.einsum('bqd,bkd->bqk', qh, kh,
                       preferred_element_type=jnp.float32) * scale
        s = s + bias_ref[...]                                 # pre-hoisted bias
        s = s - jnp.max(s, axis=-1, keepdims=True)
        p = jnp.exp(s)
        # divide -> EUP reciprocal + VPU multiply (frees VALU slot)
        p = p * pl.reciprocal(jnp.sum(p, axis=-1, keepdims=True), approx=True)
        ctx = jnp.einsum('bqk,bkd->bqd', p, vh,
                         preferred_element_type=jnp.float32)  # (NH*B, S, HD)

        # Output projection: ctx stays in vregs; wo is consumed as per-head row
        # blocks, so attn = sum_h ctx_h @ wo_h  (== concat(ctx_h) @ wo).
        attn = bo_ref[...]
        for h in range(N_HEADS):
            ctx_h = jnp.concatenate(
                [ctx[h * batch + b] for b in range(batch)], axis=0)  # (B*S, HD)
            attn = attn + jnp.dot(ctx_h, wo_ref[h],
                                  preferred_element_type=jnp.float32)

        x1 = _layer_norm(x + attn, g1_ref[...], be1_ref[...])

        # ------------------- FFN --------------------------------------------
        hfc = _gelu(jnp.dot(x1, w1_ref[...],
                            preferred_element_type=jnp.float32) + bf1_ref[...])
        ffn = jnp.dot(hfc, w2_ref[...],
                      preferred_element_type=jnp.float32) + bf2_ref[...]
        xo = _layer_norm(x1 + ffn, g2_ref[...], be2_ref[...])
        xs_ref[...] = xo

        # Lane-dense output store: pack `pack` row-blocks of (pack_rows, H)
        # side-by-side into one (pack_rows, 128) tile via constant 0/1 selector
        # matmuls (exact; avoids masked 32-lane partial stores).
        @pl.when(l == pl.num_programs(0) - 1)
        def _():
            packed = jnp.zeros((pack_rows, pack * HIDDEN), jnp.float32)
            for c in range(pack):
                packed = packed + jnp.dot(
                    xo[c * pack_rows:(c + 1) * pack_rows, :], sel_ref[c],
                    preferred_element_type=jnp.float32)
            o_ref[...] = packed

    return kernel


# ----------------------------- model forward ---------------------------------
def dfcsc_bert_last_hidden_state(params, input_ids, attention_mask):
    """Returns last_hidden_state of shape (B, S, H)."""
    B, S = input_ids.shape
    BS = B * S
    assert LANE % HIDDEN == 0
    pack = LANE // HIDDEN                       # row-blocks packed along lanes
    assert BS % pack == 0
    pack_rows = BS // pack
    assert pack_rows % 8 == 0                   # sublane-aligned row blocks

    # Embedding gathers are glue (data-dependent indexing), done in plain JAX.
    x = (params["word_emb"][input_ids]
         + params["pos_emb"][:S][None, :, :]
         + params["type_emb"][0][None, None, :])
    x2d = x.reshape(BS, HIDDEN).astype(jnp.float32)

    # Additive attention bias, hoisted entirely out of the kernel (layer/head
    # invariant): 0 where attended, -1e9 where masked, laid out (NH*B, 1, S) to
    # match the head-major stacking used in-kernel.
    mask_f = attention_mask.astype(jnp.float32)
    bias = (mask_f - 1.0) * 1e9                                  # (B, S)
    attn_bias = jnp.broadcast_to(bias[None, :, None, :],
                                 (N_HEADS, B, 1, S)).reshape(N_HEADS * B, 1, S)

    # Constant 0/1 selector matrices for the lane-dense output packing.
    sel_np = np.zeros((pack, HIDDEN, pack * HIDDEN), np.float32)
    for c in range(pack):
        sel_np[c, :, c * HIDDEN:(c + 1) * HIDDEN] = np.eye(HIDDEN, dtype=np.float32)
    sel = jnp.asarray(sel_np)

    layers = params["layers"]

    def stk(name):                      # (L, *w.shape)
        return jnp.stack([lp[name] for lp in layers], axis=0)

    def stk_row(name, width):           # (L, 1, width)
        return jnp.stack([lp[name].reshape(1, width) for lp in layers], axis=0)

    def stk_head_w(name):               # (L, NH, H, HD): column blocks per head
        return jnp.stack(
            [lp[name].reshape(HIDDEN, N_HEADS, HEAD_DIM).transpose(1, 0, 2)
             for lp in layers], axis=0)

    def stk_head_b(name):               # (L, NH, 1, HD)
        return jnp.stack(
            [lp[name].reshape(N_HEADS, 1, HEAD_DIM) for lp in layers], axis=0)

    wo_s = jnp.stack([lp["wo"].reshape(N_HEADS, HEAD_DIM, HIDDEN)
                      for lp in layers], axis=0)      # (L, NH, HD, H) row blocks

    args = [
        x2d, attn_bias, sel,
        params["emb_ln_g"].reshape(1, HIDDEN),
        params["emb_ln_b"].reshape(1, HIDDEN),
        stk_head_w("wq"), stk_head_b("bq"),
        stk_head_w("wk"), stk_head_b("bk"),
        stk_head_w("wv"), stk_head_b("bv"),
        wo_s, stk_row("bo", HIDDEN),
        stk_row("ln1_g", HIDDEN), stk_row("ln1_b", HIDDEN),
        stk("w1"), stk_row("b1", FFN),
        stk("w2"), stk_row("b2", HIDDEN),
        stk_row("ln2_g", HIDDEN), stk_row("ln2_b", HIDDEN),
    ]
    n_const = 5   # x, bias, sel, emb_ln_g, emb_ln_b: fetched once, stay resident

    def const_spec(a):
        nd = a.ndim
        return pl.BlockSpec(a.shape, lambda l, _nd=nd: (0,) * _nd)

    def layer_spec(a):
        # Stream one layer's slice per grid step (auto double-buffered DMA).
        nd = a.ndim
        blk = (None,) + a.shape[1:]
        return pl.BlockSpec(blk, lambda l, _nd=nd: (l,) + (0,) * (_nd - 1))

    in_specs = ([const_spec(a) for a in args[:n_const]]
                + [layer_spec(a) for a in args[n_const:]])

    kernel = _make_layer_kernel(B, S, pack, pack_rows)
    out = pl.pallas_call(
        kernel,
        out_shape=jax.ShapeDtypeStruct((pack_rows, pack * HIDDEN), jnp.float32),
        grid=(N_LAYERS,),
        in_specs=in_specs,
        out_specs=pl.BlockSpec((pack_rows, pack * HIDDEN), lambda l: (0, 0)),
        scratch_shapes=[pltpu.VMEM((BS, HIDDEN), jnp.float32)],
        compiler_params=pltpu.CompilerParams(
            dimension_semantics=("arbitrary",)),   # layers carry a dependency
    )(*args)

    # Unpack the lane-dense (pack_rows, 128) tile back to (B, S, H).
    hidden2d = out.reshape(pack_rows, pack, HIDDEN).transpose(1, 0, 2)
    return hidden2d.reshape(BS, HIDDEN).reshape(B, S, HIDDEN)


# ----------------------------- pure-JAX reference -----------------------------
def reference_last_hidden_state(params, input_ids, attention_mask):
    B, S = input_ids.shape
    x = (params["word_emb"][input_ids]
         + params["pos_emb"][:S][None, :, :]
         + params["type_emb"][0][None, None, :])
    x = _layer_norm(x, params["emb_ln_g"], params["emb_ln_b"])
    mask_bias = (attention_mask.astype(jnp.float32) - 1.0)[:, None, :] * 1e9
    scale = np.float32(1.0 / np.sqrt(HEAD_DIM))
    for lp in params["layers"]:
        q = x @ lp["wq"] + lp["bq"]
        k = x @ lp["wk"] + lp["bk"]
        v = x @ lp["wv"] + lp["bv"]
        outs = []
        for h in range(N_HEADS):
            sl = slice(h * HEAD_DIM, (h + 1) * HEAD_DIM)
            s = jnp.einsum("bqd,bkd->bqk", q[..., sl], k[..., sl]) * scale
            s = s + mask_bias
            p = jax.nn.softmax(s, axis=-1)
            outs.append(jnp.einsum("bqk,bkd->bqd", p, v[..., sl]))
        ctx = jnp.concatenate(outs, axis=-1)
        attn = ctx @ lp["wo"] + lp["bo"]
        x1 = _layer_norm(x + attn, lp["ln1_g"], lp["ln1_b"])
        ffn = _gelu(x1 @ lp["w1"] + lp["b1"]) @ lp["w2"] + lp["b2"]
        x = _layer_norm(x1 + ffn, lp["ln2_g"], lp["ln2_b"])
    return x


# ----------------------------- deterministic params ---------------------------
def init_params(key):
    def normal(k, shape):
        return 0.02 * jax.random.normal(k, shape, dtype=jnp.float32)

    keys = jax.random.split(key, 3 + 7 * N_LAYERS)
    params = {
        "word_emb": normal(keys[0], (VOCAB, HIDDEN)),
        "pos_emb": normal(keys[1], (MAX_POS, HIDDEN)),
        "type_emb": normal(keys[2], (2, HIDDEN)),
        "emb_ln_g": jnp.ones((HIDDEN,), jnp.float32),
        "emb_ln_b": jnp.zeros((HIDDEN,), jnp.float32),
        "layers": [],
    }
    for l in range(N_LAYERS):
        k = keys[3 + 7 * l: 3 + 7 * (l + 1)]
        params["layers"].append({
            "wq": normal(k[0], (HIDDEN, HIDDEN)), "bq": jnp.zeros((HIDDEN,), jnp.float32),
            "wk": normal(k[1], (HIDDEN, HIDDEN)), "bk": jnp.zeros((HIDDEN,), jnp.float32),
            "wv": normal(k[2], (HIDDEN, HIDDEN)), "bv": jnp.zeros((HIDDEN,), jnp.float32),
            "wo": normal(k[3], (HIDDEN, HIDDEN)), "bo": jnp.zeros((HIDDEN,), jnp.float32),
            "ln1_g": jnp.ones((HIDDEN,), jnp.float32), "ln1_b": jnp.zeros((HIDDEN,), jnp.float32),
            "w1": normal(k[4], (HIDDEN, FFN)), "b1": jnp.zeros((FFN,), jnp.float32),
            "w2": normal(k[5], (FFN, HIDDEN)), "b2": jnp.zeros((HIDDEN,), jnp.float32),
            "ln2_g": jnp.ones((HIDDEN,), jnp.float32), "ln2_b": jnp.zeros((HIDDEN,), jnp.float32),
        })
        _ = k[6]  # unused spare key (keeps splitting deterministic)
    return params


# ----------------------------- main -------------------------------------------
if __name__ == "__main__":
    B, S = 2, 16
    root = jax.random.PRNGKey(0)
    params = init_params(root)

    ids = np.array(
        jax.random.randint(jax.random.fold_in(root, 1), (B, S), 1, 100),
        dtype=np.int32)
    # Place [SEP] tokens; the first and last SEP of each row are "edge" SEPs,
    # the middle ones are "core" SEPs whose embeddings get returned.
    ids[0, [4, 8, 12, 15]] = SEP_TOKEN_ID
    ids[1, [3, 7, 11, 15]] = SEP_TOKEN_ID
    input_ids = jnp.asarray(ids)
    attention_mask = jnp.ones((B, S), dtype=jnp.int32)

    hidden = dfcsc_bert_last_hidden_state(params, input_ids, attention_mask)
    hidden = jax.block_until_ready(hidden)
    hs = np.asarray(hidden)

    # Correctness check against a pure-JAX reference of the same math.
    # (pl.reciprocal(approx=True) contributes ~1e-4-level error per layer; fine
    #  at 2 layers / rtol=1e-3 — switch to approx=False for 12+ layer parity.)
    ref = np.asarray(reference_last_hidden_state(params, input_ids, attention_mask))
    np.testing.assert_allclose(hs, ref, rtol=1e-3, atol=1e-3)

    # TODO(synk): torch.nonzero produces a data-dependent number of rows; this
    # variable-size gather is host-side glue (numpy), mirroring the PyTorch loop.
    core_embeddings = []
    for i in range(B):
        idx_seps = np.nonzero(ids[i] == SEP_TOKEN_ID)[0]
        idx_core_sep = idx_seps[1:-1]
        core_embeddings.append(hs[i, idx_core_sep, :])
    core_embeddings = np.vstack(core_embeddings)   # (n core sentences, HIDDEN)

    assert core_embeddings.shape == (4, HIDDEN)
    assert np.all(np.isfinite(core_embeddings))
    print("KERNEL_OK")
</pallas_src>

<mosaic_0001>
module attributes {stable_mosaic.version = 11 : i64} {
  func.func @kernel(%arg0: i32, %arg1: memref<32x32xf32, #tpu.memory_space<vmem>>, %arg2: memref<4x1x16xf32, #tpu.memory_space<vmem>>, %arg3: memref<4x32x128xf32, #tpu.memory_space<vmem>>, %arg4: memref<1x32xf32, #tpu.memory_space<vmem>>, %arg5: memref<1x32xf32, #tpu.memory_space<vmem>>, %arg6: memref<1x2x32x16xf32, #tpu.memory_space<vmem>>, %arg7: memref<1x2x1x16xf32, #tpu.memory_space<vmem>>, %arg8: memref<1x2x32x16xf32, #tpu.memory_space<vmem>>, %arg9: memref<1x2x1x16xf32, #tpu.memory_space<vmem>>, %arg10: memref<1x2x32x16xf32, #tpu.memory_space<vmem>>, %arg11: memref<1x2x1x16xf32, #tpu.memory_space<vmem>>, %arg12: memref<1x2x16x32xf32, #tpu.memory_space<vmem>>, %arg13: memref<1x1x32xf32, #tpu.memory_space<vmem>>, %arg14: memref<1x1x32xf32, #tpu.memory_space<vmem>>, %arg15: memref<1x1x32xf32, #tpu.memory_space<vmem>>, %arg16: memref<1x32x64xf32, #tpu.memory_space<vmem>>, %arg17: memref<1x1x64xf32, #tpu.memory_space<vmem>>, %arg18: memref<1x64x32xf32, #tpu.memory_space<vmem>>, %arg19: memref<1x1x32xf32, #tpu.memory_space<vmem>>, %arg20: memref<1x1x32xf32, #tpu.memory_space<vmem>>, %arg21: memref<1x1x32xf32, #tpu.memory_space<vmem>>, %arg22: memref<8x128xf32, #tpu.memory_space<vmem>>, %arg23: memref<32x32xf32, #tpu.memory_space<vmem>>) attributes {dimension_semantics = [#tpu.dimension_semantics<arbitrary>], iteration_bounds = array<i64: 2>, scalar_prefetch = 0 : i64, scratch_operands = 1 : i64, tpu.core_type = #tpu.core_type<tc>, window_params = [{pipeline_mode = #tpu.pipeline_mode<synchronous>, transform_indices = @transform_0, window_bounds = array<i64: 32, 32>}, {pipeline_mode = #tpu.pipeline_mode<synchronous>, transform_indices = @transform_1, window_bounds = array<i64: 4, 1, 16>}, {pipeline_mode = #tpu.pipeline_mode<synchronous>, transform_indices = @transform_2, window_bounds = array<i64: 4, 32, 128>}, {pipeline_mode = #tpu.pipeline_mode<synchronous>, transform_indices = @transform_3, window_bounds = array<i64: 1, 32>}, {pipeline_mode = #tpu.pipeline_mode<synchronous>, transform_indices = @transform_4, window_bounds = array<i64: 1, 32>}, {transform_indices = @transform_5, window_bounds = array<i64: 1, 2, 32, 16>}, {transform_indices = @transform_6, window_bounds = array<i64: 1, 2, 1, 16>}, {transform_indices = @transform_7, window_bounds = array<i64: 1, 2, 32, 16>}, {transform_indices = @transform_8, window_bounds = array<i64: 1, 2, 1, 16>}, {transform_indices = @transform_9, window_bounds = array<i64: 1, 2, 32, 16>}, {transform_indices = @transform_10, window_bounds = array<i64: 1, 2, 1, 16>}, {transform_indices = @transform_11, window_bounds = array<i64: 1, 2, 16, 32>}, {transform_indices = @transform_12, window_bounds = array<i64: 1, 1, 32>}, {transform_indices = @transform_13, window_bounds = array<i64: 1, 1, 32>}, {transform_indices = @transform_14, window_bounds = array<i64: 1, 1, 32>}, {transform_indices = @transform_15, window_bounds = array<i64: 1, 32, 64>}, {transform_indices = @transform_16, window_bounds = array<i64: 1, 1, 64>}, {transform_indices = @transform_17, window_bounds = array<i64: 1, 64, 32>}, {transform_indices = @transform_18, window_bounds = array<i64: 1, 1, 32>}, {transform_indices = @transform_19, window_bounds = array<i64: 1, 1, 32>}, {transform_indices = @transform_20, window_bounds = array<i64: 1, 1, 32>}, {pipeline_mode = #tpu.pipeline_mode<synchronous>, transform_indices = @transform_21, window_bounds = array<i64: 8, 128>}]} {
    %c0_i32 = arith.constant 0 : i32
    %0 = arith.cmpi eq, %arg0, %c0_i32 : i32
    %1 = arith.extui %0 : i1 to i32
    %c0_i32_0 = arith.constant 0 : i32
    %2 = arith.cmpi ne, %1, %c0_i32_0 : i32
    scf.if %2 {
      %c0_118 = arith.constant 0 : index
      %c0_119 = arith.constant 0 : index
      %196 = vector.load %arg1[%c0_118, %c0_119] : memref<32x32xf32, #tpu.memory_space<vmem>>, vector<32x32xf32>
      %c0_120 = arith.constant 0 : index
      %c0_121 = arith.constant 0 : index
      %197 = vector.load %arg4[%c0_120, %c0_121] : memref<1x32xf32, #tpu.memory_space<vmem>>, vector<1x32xf32>
      %c0_122 = arith.constant 0 : index
      %c0_123 = arith.constant 0 : index
      %198 = vector.load %arg5[%c0_122, %c0_123] : memref<1x32xf32, #tpu.memory_space<vmem>>, vector<1x32xf32>
      %cst_124 = arith.constant dense<0.000000e+00> : vector<32xf32>
      %199 = vector.multi_reduction <add>, %196, %cst_124 [1] : vector<32x32xf32> to vector<32xf32>
      %200 = vector.shape_cast %199 : vector<32xf32> to vector<32x1xf32>
      %cst_125 = arith.constant 3.200000e+01 : f32
      %201 = vector.broadcast %cst_125 : f32 to vector<32x1xf32>
      %202 = arith.divf %200, %201 : vector<32x1xf32>
      %203 = vector.broadcast %202 : vector<32x1xf32> to vector<32x32xf32>
      %204 = arith.subf %196, %203 : vector<32x32xf32>
      %205 = arith.mulf %204, %204 : vector<32x32xf32>
      %cst_126 = arith.constant dense<0.000000e+00> : vector<32xf32>
      %206 = vector.multi_reduction <add>, %205, %cst_126 [1] : vector<32x32xf32> to vector<32xf32>
      %207 = vector.shape_cast %206 : vector<32xf32> to vector<32x1xf32>
      %cst_127 = arith.constant 3.200000e+01 : f32
      %208 = vector.broadcast %cst_127 : f32 to vector<32x1xf32>
      %209 = arith.divf %207, %208 : vector<32x1xf32>
      %210 = vector.broadcast %202 : vector<32x1xf32> to vector<32x32xf32>
      %211 = arith.subf %196, %210 : vector<32x32xf32>
      %cst_128 = arith.constant 9.99999996E-13 : f32
      %212 = vector.broadcast %cst_128 : f32 to vector<32x1xf32>
      %213 = arith.addf %209, %212 : vector<32x1xf32>
      %214 = math.rsqrt %213 : vector<32x1xf32>
      %215 = vector.broadcast %214 : vector<32x1xf32> to vector<32x32xf32>
      %216 = arith.mulf %211, %215 : vector<32x32xf32>
      %217 = vector.broadcast %197 : vector<1x32xf32> to vector<32x32xf32>
      %218 = arith.mulf %216, %217 : vector<32x32xf32>
      %219 = vector.broadcast %198 : vector<1x32xf32> to vector<32x32xf32>
      %220 = arith.addf %218, %219 : vector<32x32xf32>
      %c0_129 = arith.constant 0 : index
      %c0_130 = arith.constant 0 : index
      %221 = vector.load %arg23[%c0_129, %c0_130] : memref<32x32xf32, #tpu.memory_space<vmem>>, vector<32x32xf32>
      tpu.vector_store %arg23[%c0_129, %c0_130], %220 {strides = array<i32>} : memref<32x32xf32, #tpu.memory_space<vmem>>, vector<32x32xf32>,
    } else {
    }
    %c0 = arith.constant 0 : index
    %c0_1 = arith.constant 0 : index
    %3 = vector.load %arg23[%c0, %c0_1] : memref<32x32xf32, #tpu.memory_space<vmem>>, vector<32x32xf32>
    %c0_2 = arith.constant 0 : index
    %c0_3 = arith.constant 0 : index
    %c0_4 = arith.constant 0 : index
    %c0_5 = arith.constant 0 : index
    %4 = vector.load %arg6[%c0_2, %c0_3, %c0_4, %c0_5] : memref<1x2x32x16xf32, #tpu.memory_space<vmem>>, vector<1x1x32x16xf32>
    %5 = vector.shape_cast %4 : vector<1x1x32x16xf32> to vector<32x16xf32>
    %cst = arith.constant dense<0.000000e+00> : vector<32x16xf32>
    %6 = tpu.matmul %3, %5, %cst {dimension_numbers = #tpu.dot_dimension_numbers<[1], [0], [0], [1], [0, 0, 1, 1], [], []>} : vector<32x32xf32>, vector<32x16xf32>, vector<32x16xf32> -> vector<32x16xf32>
    %c0_6 = arith.constant 0 : index
    %c0_7 = arith.constant 0 : index
    %c0_8 = arith.constant 0 : index
    %c0_9 = arith.constant 0 : index
    %7 = vector.load %arg7[%c0_6, %c0_7, %c0_8, %c0_9] : memref<1x2x1x16xf32, #tpu.memory_space<vmem>>, vector<1x1x1x16xf32>
    %8 = vector.shape_cast %7 : vector<1x1x1x16xf32> to vector<1x16xf32>
    %9 = vector.broadcast %8 : vector<1x16xf32> to vector<32x16xf32>
    %10 = arith.addf %6, %9 : vector<32x16xf32>
    %11 = vector.extract_strided_slice %10 {offsets = [0, 0], sizes = [16, 16], strides = [1, 1]} : vector<32x16xf32> to vector<16x16xf32>
    %12 = vector.extract_strided_slice %10 {offsets = [16, 0], sizes = [16, 16], strides = [1, 1]} : vector<32x16xf32> to vector<16x16xf32>
    %c0_10 = arith.constant 0 : index
    %c1 = arith.constant 1 : index
    %c0_11 = arith.constant 0 : index
    %c0_12 = arith.constant 0 : index
    %13 = vector.load %arg6[%c0_10, %c1, %c0_11, %c0_12] : memref<1x2x32x16xf32, #tpu.memory_space<vmem>>, vector<1x1x32x16xf32>
    %14 = vector.shape_cast %13 : vector<1x1x32x16xf32> to vector<32x16xf32>
    %cst_13 = arith.constant dense<0.000000e+00> : vector<32x16xf32>
    %15 = tpu.matmul %3, %14, %cst_13 {dimension_numbers = #tpu.dot_dimension_numbers<[1], [0], [0], [1], [0, 0, 1, 1], [], []>} : vector<32x32xf32>, vector<32x16xf32>, vector<32x16xf32> -> vector<32x16xf32>
    %c0_14 = arith.constant 0 : index
    %c1_15 = arith.constant 1 : index
    %c0_16 = arith.constant 0 : index
    %c0_17 = arith.constant 0 : index
    %16 = vector.load %arg7[%c0_14, %c1_15, %c0_16, %c0_17] : memref<1x2x1x16xf32, #tpu.memory_space<vmem>>, vector<1x1x1x16xf32>
    %17 = vector.shape_cast %16 : vector<1x1x1x16xf32> to vector<1x16xf32>
    %18 = vector.broadcast %17 : vector<1x16xf32> to vector<32x16xf32>
    %19 = arith.addf %15, %18 : vector<32x16xf32>
    %20 = vector.extract_strided_slice %19 {offsets = [0, 0], sizes = [16, 16], strides = [1, 1]} : vector<32x16xf32> to vector<16x16xf32>
    %21 = vector.extract_strided_slice %19 {offsets = [16, 0], sizes = [16, 16], strides = [1, 1]} : vector<32x16xf32> to vector<16x16xf32>
    %22 = vector.shape_cast %11 : vector<16x16xf32> to vector<1x16x16xf32>
    %23 = vector.shape_cast %12 : vector<16x16xf32> to vector<1x16x16xf32>
    %24 = vector.shape_cast %20 : vector<16x16xf32> to vector<1x16x16xf32>
    %25 = vector.shape_cast %21 : vector<16x16xf32> to vector<1x16x16xf32>
    %26 = tpu.concatenate %22, %23, %24, %25 in 0 : vector<1x16x16xf32>, vector<1x16x16xf32>, vector<1x16x16xf32>, vector<1x16x16xf32> -> vector<4x16x16xf32>
    %c0_18 = arith.constant 0 : index
    %c0_19 = arith.constant 0 : index
    %c0_20 = arith.constant 0 : index
    %c0_21 = arith.constant 0 : index
    %27 = vector.load %arg8[%c0_18, %c0_19, %c0_20, %c0_21] : memref<1x2x32x16xf32, #tpu.memory_space<vmem>>, vector<1x1x32x16xf32>
    %28 = vector.shape_cast %27 : vector<1x1x32x16xf32> to vector<32x16xf32>
    %cst_22 = arith.constant dense<0.000000e+00> : vector<32x16xf32>
    %29 = tpu.matmul %3, %28, %cst_22 {dimension_numbers = #tpu.dot_dimension_numbers<[1], [0], [0], [1], [0, 0, 1, 1], [], []>} : vector<32x32xf32>, vector<32x16xf32>, vector<32x16xf32> -> vector<32x16xf32>
    %c0_23 = arith.constant 0 : index
    %c0_24 = arith.constant 0 : index
    %c0_25 = arith.constant 0 : index
    %c0_26 = arith.constant 0 : index
    %30 = vector.load %arg9[%c0_23, %c0_24, %c0_25, %c0_26] : memref<1x2x1x16xf32, #tpu.memory_space<vmem>>, vector<1x1x1x16xf32>
    %31 = vector.shape_cast %30 : vector<1x1x1x16xf32> to vector<1x16xf32>
    %32 = vector.broadcast %31 : vector<1x16xf32> to vector<32x16xf32>
    %33 = arith.addf %29, %32 : vector<32x16xf32>
    %34 = vector.extract_strided_slice %33 {offsets = [0, 0], sizes = [16, 16], strides = [1, 1]} : vector<32x16xf32> to vector<16x16xf32>
    %35 = vector.extract_strided_slice %33 {offsets = [16, 0], sizes = [16, 16], strides = [1, 1]} : vector<32x16xf32> to vector<16x16xf32>
    %c0_27 = arith.constant 0 : index
    %c1_28 = arith.constant 1 : index
    %c0_29 = arith.constant 0 : index
    %c0_30 = arith.constant 0 : index
    %36 = vector.load %arg8[%c0_27, %c1_28, %c0_29, %c0_30] : memref<1x2x32x16xf32, #tpu.memory_space<vmem>>, vector<1x1x32x16xf32>
    %37 = vector.shape_cast %36 : vector<1x1x32x16xf32> to vector<32x16xf32>
    %cst_31 = arith.constant dense<0.000000e+00> : vector<32x16xf32>
    %38 = tpu.matmul %3, %37, %cst_31 {dimension_numbers = #tpu.dot_dimension_numbers<[1], [0], [0], [1], [0, 0, 1, 1], [], []>} : vector<32x32xf32>, vector<32x16xf32>, vector<32x16xf32> -> vector<32x16xf32>
    %c0_32 = arith.constant 0 : index
    %c1_33 = arith.constant 1 : index
    %c0_34 = arith.constant 0 : index
    %c0_35 = arith.constant 0 : index
    %39 = vector.load %arg9[%c0_32, %c1_33, %c0_34, %c0_35] : memref<1x2x1x16xf32, #tpu.memory_space<vmem>>, vector<1x1x1x16xf32>
    %40 = vector.shape_cast %39 : vector<1x1x1x16xf32> to vector<1x16xf32>
    %41 = vector.broadcast %40 : vector<1x16xf32> to vector<32x16xf32>
    %42 = arith.addf %38, %41 : vector<32x16xf32>
    %43 = vector.extract_strided_slice %42 {offsets = [0, 0], sizes = [16, 16], strides = [1, 1]} : vector<32x16xf32> to vector<16x16xf32>
    %44 = vector.extract_strided_slice %42 {offsets = [16, 0], sizes = [16, 16], strides = [1, 1]} : vector<32x16xf32> to vector<16x16xf32>
    %45 = vector.shape_cast %34 : vector<16x16xf32> to vector<1x16x16xf32>
    %46 = vector.shape_cast %35 : vector<16x16xf32> to vector<1x16x16xf32>
    %47 = vector.shape_cast %43 : vector<16x16xf32> to vector<1x16x16xf32>
    %48 = vector.shape_cast %44 : vector<16x16xf32> to vector<1x16x16xf32>
    %49 = tpu.concatenate %45, %46, %47, %48 in 0 : vector<1x16x16xf32>, vector<1x16x16xf32>, vector<1x16x16xf32>, vector<1x16x16xf32> -> vector<4x16x16xf32>
    %c0_36 = arith.constant 0 : index
    %c0_37 = arith.constant 0 : index
    %c0_38 = arith.constant 0 : index
    %c0_39 = arith.constant 0 : index
    %50 = vector.load %arg10[%c0_36, %c0_37, %c0_38, %c0_39] : memref<1x2x32x16xf32, #tpu.memory_space<vmem>>, vector<1x1x32x16xf32>
    %51 = vector.shape_cast %50 : vector<1x1x32x16xf32> to vector<32x16xf32>
    %cst_40 = arith.constant dense<0.000000e+00> : vector<32x16xf32>
    %52 = tpu.matmul %3, %51, %cst_40 {dimension_numbers = #tpu.dot_dimension_numbers<[1], [0], [0], [1], [0, 0, 1, 1], [], []>} : vector<32x32xf32>, vector<32x16xf32>, vector<32x16xf32> -> vector<32x16xf32>
    %c0_41 = arith.constant 0 : index
    %c0_42 = arith.constant 0 : index
    %c0_43 = arith.constant 0 : index
    %c0_44 = arith.constant 0 : index
    %53 = vector.load %arg11[%c0_41, %c0_42, %c0_43, %c0_44] : memref<1x2x1x16xf32, #tpu.memory_space<vmem>>, vector<1x1x1x16xf32>
    %54 = vector.shape_cast %53 : vector<1x1x1x16xf32> to vector<1x16xf32>
    %55 = vector.broadcast %54 : vector<1x16xf32> to vector<32x16xf32>
    %56 = arith.addf %52, %55 : vector<32x16xf32>
    %57 = vector.extract_strided_slice %56 {offsets = [0, 0], sizes = [16, 16], strides = [1, 1]} : vector<32x16xf32> to vector<16x16xf32>
    %58 = vector.extract_strided_slice %56 {offsets = [16, 0], sizes = [16, 16], strides = [1, 1]} : vector<32x16xf32> to vector<16x16xf32>
    %c0_45 = arith.constant 0 : index
    %c1_46 = arith.constant 1 : index
    %c0_47 = arith.constant 0 : index
    %c0_48 = arith.constant 0 : index
    %59 = vector.load %arg10[%c0_45, %c1_46, %c0_47, %c0_48] : memref<1x2x32x16xf32, #tpu.memory_space<vmem>>, vector<1x1x32x16xf32>
    %60 = vector.shape_cast %59 : vector<1x1x32x16xf32> to vector<32x16xf32>
    %cst_49 = arith.constant dense<0.000000e+00> : vector<32x16xf32>
    %61 = tpu.matmul %3, %60, %cst_49 {dimension_numbers = #tpu.dot_dimension_numbers<[1], [0], [0], [1], [0, 0, 1, 1], [], []>} : vector<32x32xf32>, vector<32x16xf32>, vector<32x16xf32> -> vector<32x16xf32>
    %c0_50 = arith.constant 0 : index
    %c1_51 = arith.constant 1 : index
    %c0_52 = arith.constant 0 : index
    %c0_53 = arith.constant 0 : index
    %62 = vector.load %arg11[%c0_50, %c1_51, %c0_52, %c0_53] : memref<1x2x1x16xf32, #tpu.memory_space<vmem>>, vector<1x1x1x16xf32>
    %63 = vector.shape_cast %62 : vector<1x1x1x16xf32> to vector<1x16xf32>
    %64 = vector.broadcast %63 : vector<1x16xf32> to vector<32x16xf32>
    %65 = arith.addf %61, %64 : vector<32x16xf32>
    %66 = vector.extract_strided_slice %65 {offsets = [0, 0], sizes = [16, 16], strides = [1, 1]} : vector<32x16xf32> to vector<16x16xf32>
    %67 = vector.extract_strided_slice %65 {offsets = [16, 0], sizes = [16, 16], strides = [1, 1]} : vector<32x16xf32> to vector<16x16xf32>
    %68 = vector.shape_cast %57 : vector<16x16xf32> to vector<1x16x16xf32>
    %69 = vector.shape_cast %58 : vector<16x16xf32> to vector<1x16x16xf32>
    %70 = vector.shape_cast %66 : vector<16x16xf32> to vector<1x16x16xf32>
    %71 = vector.shape_cast %67 : vector<16x16xf32> to vector<1x16x16xf32>
    %72 = tpu.concatenate %68, %69, %70, %71 in 0 : vector<1x16x16xf32>, vector<1x16x16xf32>, vector<1x16x16xf32>, vector<1x16x16xf32> -> vector<4x16x16xf32>
    "tpu.trace_start"() <{level = 10 : i32, message = "bqd,bkd->bqk"}> : () -> ()
    %cst_54 = arith.constant dense<0.000000e+00> : vector<4x16x16xf32>
    %73 = tpu.matmul %26, %49, %cst_54 {dimension_numbers = #tpu.dot_dimension_numbers<[2], [2], [1], [1], [0, 0, 0, 1, 1, 1], [0], [0]>} : vector<4x16x16xf32>, vector<4x16x16xf32>, vector<4x16x16xf32> -> vector<4x16x16xf32>
    "tpu.trace_stop"() : () -> ()
    %cst_55 = arith.constant 2.500000e-01 : f32
    %74 = vector.broadcast %cst_55 : f32 to vector<4x16x16xf32>
    %75 = arith.mulf %73, %74 : vector<4x16x16xf32>
    %c0_56 = arith.constant 0 : index
    %c0_57 = arith.constant 0 : index
    %c0_58 = arith.constant 0 : index
    %76 = vector.load %arg2[%c0_56, %c0_57, %c0_58] : memref<4x1x16xf32, #tpu.memory_space<vmem>>, vector<4x1x16xf32>
    %77 = vector.broadcast %76 : vector<4x1x16xf32> to vector<4x16x16xf32>
    %78 = arith.addf %75, %77 : vector<4x16x16xf32>
    %cst_59 = arith.constant dense<0xFF800000> : vector<4x16xf32>
    %79 = vector.multi_reduction <maximumf>, %78, %cst_59 [2] : vector<4x16x16xf32> to vector<4x16xf32>
    %80 = vector.shape_cast %79 : vector<4x16xf32> to vector<4x16x1xf32>
    %81 = vector.broadcast %80 : vector<4x16x1xf32> to vector<4x16x16xf32>
    %82 = arith.subf %78, %81 : vector<4x16x16xf32>
    %83 = math.exp %82 : vector<4x16x16xf32>
    %cst_60 = arith.constant dense<0.000000e+00> : vector<4x16xf32>
    %84 = vector.multi_reduction <add>, %83, %cst_60 [2] : vector<4x16x16xf32> to vector<4x16xf32>
    %85 = vector.shape_cast %84 : vector<4x16xf32> to vector<4x16x1xf32>
    %86 = tpu.reciprocal %85 {approx = true} : vector<4x16x1xf32> -> vector<4x16x1xf32>
    %87 = vector.broadcast %86 : vector<4x16x1xf32> to vector<4x16x16xf32>
    %88 = arith.mulf %83, %87 : vector<4x16x16xf32>
    "tpu.trace_start"() <{level = 10 : i32, message = "bqk,bkd->bqd"}> : () -> ()
    %cst_61 = arith.constant dense<0.000000e+00> : vector<4x16x16xf32>
    %89 = tpu.matmul %88, %72, %cst_61 {dimension_numbers = #tpu.dot_dimension_numbers<[2], [1], [1], [2], [0, 0, 0, 1, 1, 2], [0], [0]>} : vector<4x16x16xf32>, vector<4x16x16xf32>, vector<4x16x16xf32> -> vector<4x16x16xf32>
    "tpu.trace_stop"() : () -> ()
    %c0_62 = arith.constant 0 : index
    %c0_63 = arith.constant 0 : index
    %c0_64 = arith.constant 0 : index
    %90 = vector.load %arg13[%c0_62, %c0_63, %c0_64] : memref<1x1x32xf32, #tpu.memory_space<vmem>>, vector<1x1x32xf32>
    %91 = vector.shape_cast %90 : vector<1x1x32xf32> to vector<1x32xf32>
    %92 = vector.extract_strided_slice %89 {offsets = [0, 0, 0], sizes = [1, 16, 16], strides = [1, 1, 1]} : vector<4x16x16xf32> to vector<1x16x16xf32>
    %93 = vector.shape_cast %92 : vector<1x16x16xf32> to vector<16x16xf32>
    %94 = vector.extract_strided_slice %89 {offsets = [1, 0, 0], sizes = [1, 16, 16], strides = [1, 1, 1]} : vector<4x16x16xf32> to vector<1x16x16xf32>
    %95 = vector.shape_cast %94 : vector<1x16x16xf32> to vector<16x16xf32>
    %96 = tpu.concatenate %93, %95 in 0 : vector<16x16xf32>, vector<16x16xf32> -> vector<32x16xf32>
    %c0_65 = arith.constant 0 : index
    %c0_66 = arith.constant 0 : index
    %c0_67 = arith.constant 0 : index
    %c0_68 = arith.constant 0 : index
    %97 = vector.load %arg12[%c0_65, %c0_66, %c0_67, %c0_68] : memref<1x2x16x32xf32, #tpu.memory_space<vmem>>, vector<1x1x16x32xf32>
    %98 = vector.shape_cast %97 : vector<1x1x16x32xf32> to vector<16x32xf32>
    %cst_69 = arith.constant dense<0.000000e+00> : vector<32x32xf32>
    %99 = tpu.matmul %96, %98, %cst_69 {dimension_numbers = #tpu.dot_dimension_numbers<[1], [0], [0], [1], [0, 0, 1, 1], [], []>} : vector<32x16xf32>, vector<16x32xf32>, vector<32x32xf32> -> vector<32x32xf32>
    %100 = vector.broadcast %91 : vector<1x32xf32> to vector<32x32xf32>
    %101 = arith.addf %100, %99 : vector<32x32xf32>
    %102 = vector.extract_strided_slice %89 {offsets = [2, 0, 0], sizes = [1, 16, 16], strides = [1, 1, 1]} : vector<4x16x16xf32> to vector<1x16x16xf32>
    %103 = vector.shape_cast %102 : vector<1x16x16xf32> to vector<16x16xf32>
    %104 = vector.extract_strided_slice %89 {offsets = [3, 0, 0], sizes = [1, 16, 16], strides = [1, 1, 1]} : vector<4x16x16xf32> to vector<1x16x16xf32>
    %105 = vector.shape_cast %104 : vector<1x16x16xf32> to vector<16x16xf32>
    %106 = tpu.concatenate %103, %105 in 0 : vector<16x16xf32>, vector<16x16xf32> -> vector<32x16xf32>
    %c0_70 = arith.constant 0 : index
    %c1_71 = arith.constant 1 : index
    %c0_72 = arith.constant 0 : index
    %c0_73 = arith.constant 0 : index
    %107 = vector.load %arg12[%c0_70, %c1_71, %c0_72, %c0_73] : memref<1x2x16x32xf32, #tpu.memory_space<vmem>>, vector<1x1x16x32xf32>
    %108 = vector.shape_cast %107 : vector<1x1x16x32xf32> to vector<16x32xf32>
    %cst_74 = arith.constant dense<0.000000e+00> : vector<32x32xf32>
    %109 = tpu.matmul %106, %108, %cst_74 {dimension_numbers = #tpu.dot_dimension_numbers<[1], [0], [0], [1], [0, 0, 1, 1], [], []>} : vector<32x16xf32>, vector<16x32xf32>, vector<32x32xf32> -> vector<32x32xf32>
    %110 = arith.addf %101, %109 : vector<32x32xf32>
    %111 = arith.addf %3, %110 : vector<32x32xf32>
    %c0_75 = arith.constant 0 : index
    %c0_76 = arith.constant 0 : index
    %c0_77 = arith.constant 0 : index
    %112 = vector.load %arg14[%c0_75, %c0_76, %c0_77] : memref<1x1x32xf32, #tpu.memory_space<vmem>>, vector<1x1x32xf32>
    %113 = vector.shape_cast %112 : vector<1x1x32xf32> to vector<1x32xf32>
    %c0_78 = arith.constant 0 : index
    %c0_79 = arith.constant 0 : index
    %c0_80 = arith.constant 0 : index
    %114 = vector.load %arg15[%c0_78, %c0_79, %c0_80] : memref<1x1x32xf32, #tpu.memory_space<vmem>>, vector<1x1x32xf32>
    %115 = vector.shape_cast %114 : vector<1x1x32xf32> to vector<1x32xf32>
    %cst_81 = arith.constant dense<0.000000e+00> : vector<32xf32>
    %116 = vector.multi_reduction <add>, %111, %cst_81 [1] : vector<32x32xf32> to vector<32xf32>
    %117 = vector.shape_cast %116 : vector<32xf32> to vector<32x1xf32>
    %cst_82 = arith.constant 3.200000e+01 : f32
    %118 = vector.broadcast %cst_82 : f32 to vector<32x1xf32>
    %119 = arith.divf %117, %118 : vector<32x1xf32>
    %120 = vector.broadcast %119 : vector<32x1xf32> to vector<32x32xf32>
    %121 = arith.subf %111, %120 : vector<32x32xf32>
    %122 = arith.mulf %121, %121 : vector<32x32xf32>
    %cst_83 = arith.constant dense<0.000000e+00> : vector<32xf32>
    %123 = vector.multi_reduction <add>, %122, %cst_83 [1] : vector<32x32xf32> to vector<32xf32>
    %124 = vector.shape_cast %123 : vector<32xf32> to vector<32x1xf32>
    %cst_84 = arith.constant 3.200000e+01 : f32
    %125 = vector.broadcast %cst_84 : f32 to vector<32x1xf32>
    %126 = arith.divf %124, %125 : vector<32x1xf32>
    %127 = vector.broadcast %119 : vector<32x1xf32> to vector<32x32xf32>
    %128 = arith.subf %111, %127 : vector<32x32xf32>
    %cst_85 = arith.constant 9.99999996E-13 : f32
    %129 = vector.broadcast %cst_85 : f32 to vector<32x1xf32>
    %130 = arith.addf %126, %129 : vector<32x1xf32>
    %131 = math.rsqrt %130 : vector<32x1xf32>
    %132 = vector.broadcast %131 : vector<32x1xf32> to vector<32x32xf32>
    %133 = arith.mulf %128, %132 : vector<32x32xf32>
    %134 = vector.broadcast %113 : vector<1x32xf32> to vector<32x32xf32>
    %135 = arith.mulf %133, %134 : vector<32x32xf32>
    %136 = vector.broadcast %115 : vector<1x32xf32> to vector<32x32xf32>
    %137 = arith.addf %135, %136 : vector<32x32xf32>
    %c0_86 = arith.constant 0 : index
    %c0_87 = arith.constant 0 : index
    %c0_88 = arith.constant 0 : index
    %138 = vector.load %arg16[%c0_86, %c0_87, %c0_88] : memref<1x32x64xf32, #tpu.memory_space<vmem>>, vector<1x32x64xf32>
    %139 = vector.shape_cast %138 : vector<1x32x64xf32> to vector<32x64xf32>
    %cst_89 = arith.constant dense<0.000000e+00> : vector<32x64xf32>
    %140 = tpu.matmul %137, %139, %cst_89 {dimension_numbers = #tpu.dot_dimension_numbers<[1], [0], [0], [1], [0, 0, 1, 1], [], []>} : vector<32x32xf32>, vector<32x64xf32>, vector<32x64xf32> -> vector<32x64xf32>
    %c0_90 = arith.constant 0 : index
    %c0_91 = arith.constant 0 : index
    %c0_92 = arith.constant 0 : index
    %141 = vector.load %arg17[%c0_90, %c0_91, %c0_92] : memref<1x1x64xf32, #tpu.memory_space<vmem>>, vector<1x1x64xf32>
    %142 = vector.shape_cast %141 : vector<1x1x64xf32> to vector<1x64xf32>
    %143 = vector.broadcast %142 : vector<1x64xf32> to vector<32x64xf32>
    %144 = arith.addf %140, %143 : vector<32x64xf32>
    %cst_93 = arith.constant 5.000000e-01 : f32
    %145 = vector.broadcast %cst_93 : f32 to vector<32x64xf32>
    %146 = arith.mulf %145, %144 : vector<32x64xf32>
    %cst_94 = arith.constant 4.471500e-02 : f32
    %147 = vector.broadcast %cst_94 : f32 to vector<32x64xf32>
    %148 = arith.mulf %147, %144 : vector<32x64xf32>
    %149 = arith.mulf %148, %144 : vector<32x64xf32>
    %150 = arith.mulf %149, %144 : vector<32x64xf32>
    %151 = arith.addf %144, %150 : vector<32x64xf32>
    %cst_95 = arith.constant 0.797884583 : f32
    %152 = vector.broadcast %cst_95 : f32 to vector<32x64xf32>
    %153 = arith.mulf %152, %151 : vector<32x64xf32>
    %154 = math.tanh %153 : vector<32x64xf32>
    %cst_96 = arith.constant 1.000000e+00 : f32
    %155 = vector.broadcast %cst_96 : f32 to vector<32x64xf32>
    %156 = arith.addf %155, %154 : vector<32x64xf32>
    %157 = arith.mulf %146, %156 : vector<32x64xf32>
    %c0_97 = arith.constant 0 : index
    %c0_98 = arith.constant 0 : index
    %c0_99 = arith.constant 0 : index
    %158 = vector.load %arg18[%c0_97, %c0_98, %c0_99] : memref<1x64x32xf32, #tpu.memory_space<vmem>>, vector<1x64x32xf32>
    %159 = vector.shape_cast %158 : vector<1x64x32xf32> to vector<64x32xf32>
    %cst_100 = arith.constant dense<0.000000e+00> : vector<32x32xf32>
    %160 = tpu.matmul %157, %159, %cst_100 {dimension_numbers = #tpu.dot_dimension_numbers<[1], [0], [0], [1], [0, 0, 1, 1], [], []>} : vector<32x64xf32>, vector<64x32xf32>, vector<32x32xf32> -> vector<32x32xf32>
    %c0_101 = arith.constant 0 : index
    %c0_102 = arith.constant 0 : index
    %c0_103 = arith.constant 0 : index
    %161 = vector.load %arg19[%c0_101, %c0_102, %c0_103] : memref<1x1x32xf32, #tpu.memory_space<vmem>>, vector<1x1x32xf32>
    %162 = vector.shape_cast %161 : vector<1x1x32xf32> to vector<1x32xf32>
    %163 = vector.broadcast %162 : vector<1x32xf32> to vector<32x32xf32>
    %164 = arith.addf %160, %163 : vector<32x32xf32>
    %165 = arith.addf %137, %164 : vector<32x32xf32>
    %c0_104 = arith.constant 0 : index
    %c0_105 = arith.constant 0 : index
    %c0_106 = arith.constant 0 : index
    %166 = vector.load %arg20[%c0_104, %c0_105, %c0_106] : memref<1x1x32xf32, #tpu.memory_space<vmem>>, vector<1x1x32xf32>
    %167 = vector.shape_cast %166 : vector<1x1x32xf32> to vector<1x32xf32>
    %c0_107 = arith.constant 0 : index
    %c0_108 = arith.constant 0 : index
    %c0_109 = arith.constant 0 : index
    %168 = vector.load %arg21[%c0_107, %c0_108, %c0_109] : memref<1x1x32xf32, #tpu.memory_space<vmem>>, vector<1x1x32xf32>
    %169 = vector.shape_cast %168 : vector<1x1x32xf32> to vector<1x32xf32>
    %cst_110 = arith.constant dense<0.000000e+00> : vector<32xf32>
    %170 = vector.multi_reduction <add>, %165, %cst_110 [1] : vector<32x32xf32> to vector<32xf32>
    %171 = vector.shape_cast %170 : vector<32xf32> to vector<32x1xf32>
    %cst_111 = arith.constant 3.200000e+01 : f32
    %172 = vector.broadcast %cst_111 : f32 to vector<32x1xf32>
    %173 = arith.divf %171, %172 : vector<32x1xf32>
    %174 = vector.broadcast %173 : vector<32x1xf32> to vector<32x32xf32>
    %175 = arith.subf %165, %174 : vector<32x32xf32>
    %176 = arith.mulf %175, %175 : vector<32x32xf32>
    %cst_112 = arith.constant dense<0.000000e+00> : vector<32xf32>
    %177 = vector.multi_reduction <add>, %176, %cst_112 [1] : vector<32x32xf32> to vector<32xf32>
    %178 = vector.shape_cast %177 : vector<32xf32> to vector<32x1xf32>
    %cst_113 = arith.constant 3.200000e+01 : f32
    %179 = vector.broadcast %cst_113 : f32 to vector<32x1xf32>
    %180 = arith.divf %178, %179 : vector<32x1xf32>
    %181 = vector.broadcast %173 : vector<32x1xf32> to vector<32x32xf32>
    %182 = arith.subf %165, %181 : vector<32x32xf32>
    %cst_114 = arith.constant 9.99999996E-13 : f32
    %183 = vector.broadcast %cst_114 : f32 to vector<32x1xf32>
    %184 = arith.addf %180, %183 : vector<32x1xf32>
    %185 = math.rsqrt %184 : vector<32x1xf32>
    %186 = vector.broadcast %185 : vector<32x1xf32> to vector<32x32xf32>
    %187 = arith.mulf %182, %186 : vector<32x32xf32>
    %188 = vector.broadcast %167 : vector<1x32xf32> to vector<32x32xf32>
    %189 = arith.mulf %187, %188 : vector<32x32xf32>
    %190 = vector.broadcast %169 : vector<1x32xf32> to vector<32x32xf32>
    %191 = arith.addf %189, %190 : vector<32x32xf32>
    %c0_115 = arith.constant 0 : index
    %c0_116 = arith.constant 0 : index
    %192 = vector.load %arg23[%c0_115, %c0_116] : memref<32x32xf32, #tpu.memory_space<vmem>>, vector<32x32xf32>
    tpu.vector_store %arg23[%c0_115, %c0_116], %191 {strides = array<i32>} : memref<32x32xf32, #tpu.memory_space<vmem>>, vector<32x32xf32>,
    %c1_i32 = arith.constant 1 : i32
    %193 = arith.cmpi eq, %arg0, %c1_i32 : i32
    %194 = arith.extui %193 : i1 to i32
    %c0_i32_117 = arith.constant 0 : i32
    %195 = arith.cmpi ne, %194, %c0_i32_117 : i32
    scf.if %195 {
      %cst_118 = arith.constant 0.000000e+00 : f32
      %196 = vector.broadcast %cst_118 : f32 to vector<8x128xf32>
      %197 = vector.extract_strided_slice %191 {offsets = [0, 0], sizes = [8, 32], strides = [1, 1]} : vector<32x32xf32> to vector<8x32xf32>
      %c0_119 = arith.constant 0 : index
      %c0_120 = arith.constant 0 : index
      %c0_121 = arith.constant 0 : index
      %198 = vector.load %arg3[%c0_119, %c0_120, %c0_121] : memref<4x32x128xf32, #tpu.memory_space<vmem>>, vector<1x32x128xf32>
      %199 = vector.shape_cast %198 : vector<1x32x128xf32> to vector<32x128xf32>
      %cst_122 = arith.constant dense<0.000000e+00> : vector<8x128xf32>
      %200 = tpu.matmul %197, %199, %cst_122 {dimension_numbers = #tpu.dot_dimension_numbers<[1], [0], [0], [1], [0, 0, 1, 1], [], []>} : vector<8x32xf32>, vector<32x128xf32>, vector<8x128xf32> -> vector<8x128xf32>
      %201 = arith.addf %196, %200 : vector<8x128xf32>
      %202 = vector.extract_strided_slice %191 {offsets = [8, 0], sizes = [8, 32], strides = [1, 1]} : vector<32x32xf32> to vector<8x32xf32>
      %c1_123 = arith.constant 1 : index
      %c0_124 = arith.constant 0 : index
      %c0_125 = arith.constant 0 : index
      %203 = vector.load %arg3[%c1_123, %c0_124, %c0_125] : memref<4x32x128xf32, #tpu.memory_space<vmem>>, vector<1x32x128xf32>
      %204 = vector.shape_cast %203 : vector<1x32x128xf32> to vector<32x128xf32>
      %cst_126 = arith.constant dense<0.000000e+00> : vector<8x128xf32>
      %205 = tpu.matmul %202, %204, %cst_126 {dimension_numbers = #tpu.dot_dimension_numbers<[1], [0], [0], [1], [0, 0, 1, 1], [], []>} : vector<8x32xf32>, vector<32x128xf32>, vector<8x128xf32> -> vector<8x128xf32>
      %206 = arith.addf %201, %205 : vector<8x128xf32>
      %207 = vector.extract_strided_slice %191 {offsets = [16, 0], sizes = [8, 32], strides = [1, 1]} : vector<32x32xf32> to vector<8x32xf32>
      %c2 = arith.constant 2 : index
      %c0_127 = arith.constant 0 : index
      %c0_128 = arith.constant 0 : index
      %208 = vector.load %arg3[%c2, %c0_127, %c0_128] : memref<4x32x128xf32, #tpu.memory_space<vmem>>, vector<1x32x128xf32>
      %209 = vector.shape_cast %208 : vector<1x32x128xf32> to vector<32x128xf32>
      %cst_129 = arith.constant dense<0.000000e+00> : vector<8x128xf32>
      %210 = tpu.matmul %207, %209, %cst_129 {dimension_numbers = #tpu.dot_dimension_numbers<[1], [0], [0], [1], [0, 0, 1, 1], [], []>} : vector<8x32xf32>, vector<32x128xf32>, vector<8x128xf32> -> vector<8x128xf32>
      %211 = arith.addf %206, %210 : vector<8x128xf32>
      %212 = vector.extract_strided_slice %191 {offsets = [24, 0], sizes = [8, 32], strides = [1, 1]} : vector<32x32xf32> to vector<8x32xf32>
      %c3 = arith.constant 3 : index
      %c0_130 = arith.constant 0 : index
      %c0_131 = arith.constant 0 : index
      %213 = vector.load %arg3[%c3, %c0_130, %c0_131] : memref<4x32x128xf32, #tpu.memory_space<vmem>>, vector<1x32x128xf32>
      %214 = vector.shape_cast %213 : vector<1x32x128xf32> to vector<32x128xf32>
      %cst_132 = arith.constant dense<0.000000e+00> : vector<8x128xf32>
      %215 = tpu.matmul %212, %214, %cst_132 {dimension_numbers = #tpu.dot_dimension_numbers<[1], [0], [0], [1], [0, 0, 1, 1], [], []>} : vector<8x32xf32>, vector<32x128xf32>, vector<8x128xf32> -> vector<8x128xf32>
      %216 = arith.addf %211, %215 : vector<8x128xf32>
      %c0_133 = arith.constant 0 : index
      %c0_134 = arith.constant 0 : index
      %217 = vector.load %arg22[%c0_133, %c0_134] : memref<8x128xf32, #tpu.memory_space<vmem>>, vector<8x128xf32>
      tpu.vector_store %arg22[%c0_133, %c0_134], %216 {strides = array<i32>} : memref<8x128xf32, #tpu.memory_space<vmem>>, vector<8x128xf32>,
    } else {
    }
    return
  }
  func.func @transform_0(%arg0: i32) -> (i32, i32) {
    %c0_i32 = arith.constant 0 : i32
    %c0_i32_0 = arith.constant 0 : i32
    %c0_i32_1 = arith.constant 0 : i32
    return %c0_i32, %c0_i32_0 : i32, i32
  }
  func.func @transform_1(%arg0: i32) -> (i32, i32, i32) {
    %c0_i32 = arith.constant 0 : i32
    %c0_i32_0 = arith.constant 0 : i32
    %c0_i32_1 = arith.constant 0 : i32
    %c0_i32_2 = arith.constant 0 : i32
    return %c0_i32, %c0_i32_0, %c0_i32_1 : i32, i32, i32
  }
  func.func @transform_2(%arg0: i32) -> (i32, i32, i32) {
    %c0_i32 = arith.constant 0 : i32
    %c0_i32_0 = arith.constant 0 : i32
    %c0_i32_1 = arith.constant 0 : i32
    %c0_i32_2 = arith.constant 0 : i32
    return %c0_i32, %c0_i32_0, %c0_i32_1 : i32, i32, i32
  }
  func.func @transform_3(%arg0: i32) -> (i32, i32) {
    %c0_i32 = arith.constant 0 : i32
    %c0_i32_0 = arith.constant 0 : i32
    %c0_i32_1 = arith.constant 0 : i32
    return %c0_i32, %c0_i32_0 : i32, i32
  }
  func.func @transform_4(%arg0: i32) -> (i32, i32) {
    %c0_i32 = arith.constant 0 : i32
    %c0_i32_0 = arith.constant 0 : i32
    %c0_i32_1 = arith.constant 0 : i32
    return %c0_i32, %c0_i32_0 : i32, i32
  }
  func.func @transform_5(%arg0: i32) -> (i32, i32, i32, i32) {
    %c0_i32 = arith.constant 0 : i32
    %c0_i32_0 = arith.constant 0 : i32
    %c0_i32_1 = arith.constant 0 : i32
    %c0_i32_2 = arith.constant 0 : i32
    return %arg0, %c0_i32, %c0_i32_0, %c0_i32_1 : i32, i32, i32, i32
  }
  func.func @transform_6(%arg0: i32) -> (i32, i32, i32, i32) {
    %c0_i32 = arith.constant 0 : i32
    %c0_i32_0 = arith.constant 0 : i32
    %c0_i32_1 = arith.constant 0 : i32
    %c0_i32_2 = arith.constant 0 : i32
    return %arg0, %c0_i32, %c0_i32_0, %c0_i32_1 : i32, i32, i32, i32
  }
  func.func @transform_7(%arg0: i32) -> (i32, i32, i32, i32) {
    %c0_i32 = arith.constant 0 : i32
    %c0_i32_0 = arith.constant 0 : i32
    %c0_i32_1 = arith.constant 0 : i32
    %c0_i32_2 = arith.constant 0 : i32
    return %arg0, %c0_i32, %c0_i32_0, %c0_i32_1 : i32, i32, i32, i32
  }
  func.func @transform_8(%arg0: i32) -> (i32, i32, i32, i32) {
    %c0_i32 = arith.constant 0 : i32
    %c0_i32_0 = arith.constant 0 : i32
    %c0_i32_1 = arith.constant 0 : i32
    %c0_i32_2 = arith.constant 0 : i32
    return %arg0, %c0_i32, %c0_i32_0, %c0_i32_1 : i32, i32, i32, i32
  }
  func.func @transform_9(%arg0: i32) -> (i32, i32, i32, i32) {
    %c0_i32 = arith.constant 0 : i32
    %c0_i32_0 = arith.constant 0 : i32
    %c0_i32_1 = arith.constant 0 : i32
    %c0_i32_2 = arith.constant 0 : i32
    return %arg0, %c0_i32, %c0_i32_0, %c0_i32_1 : i32, i32, i32, i32
  }
  func.func @transform_10(%arg0: i32) -> (i32, i32, i32, i32) {
    %c0_i32 = arith.constant 0 : i32
    %c0_i32_0 = arith.constant 0 : i32
    %c0_i32_1 = arith.constant 0 : i32
    %c0_i32_2 = arith.constant 0 : i32
    return %arg0, %c0_i32, %c0_i32_0, %c0_i32_1 : i32, i32, i32, i32
  }
  func.func @transform_11(%arg0: i32) -> (i32, i32, i32, i32) {
    %c0_i32 = arith.constant 0 : i32
    %c0_i32_0 = arith.constant 0 : i32
    %c0_i32_1 = arith.constant 0 : i32
    %c0_i32_2 = arith.constant 0 : i32
    return %arg0, %c0_i32, %c0_i32_0, %c0_i32_1 : i32, i32, i32, i32
  }
  func.func @transform_12(%arg0: i32) -> (i32, i32, i32) {
    %c0_i32 = arith.constant 0 : i32
    %c0_i32_0 = arith.constant 0 : i32
    %c0_i32_1 = arith.constant 0 : i32
    return %arg0, %c0_i32, %c0_i32_0 : i32, i32, i32
  }
  func.func @transform_13(%arg0: i32) -> (i32, i32, i32) {
    %c0_i32 = arith.constant 0 : i32
    %c0_i32_0 = arith.constant 0 : i32
    %c0_i32_1 = arith.constant 0 : i32
    return %arg0, %c0_i32, %c0_i32_0 : i32, i32, i32
  }
  func.func @transform_14(%arg0: i32) -> (i32, i32, i32) {
    %c0_i32 = arith.constant 0 : i32
    %c0_i32_0 = arith.constant 0 : i32
    %c0_i32_1 = arith.constant 0 : i32
    return %arg0, %c0_i32, %c0_i32_0 : i32, i32, i32
  }
  func.func @transform_15(%arg0: i32) -> (i32, i32, i32) {
    %c0_i32 = arith.constant 0 : i32
    %c0_i32_0 = arith.constant 0 : i32
    %c0_i32_1 = arith.constant 0 : i32
    return %arg0, %c0_i32, %c0_i32_0 : i32, i32, i32
  }
  func.func @transform_16(%arg0: i32) -> (i32, i32, i32) {
    %c0_i32 = arith.constant 0 : i32
    %c0_i32_0 = arith.constant 0 : i32
    %c0_i32_1 = arith.constant 0 : i32
    return %arg0, %c0_i32, %c0_i32_0 : i32, i32, i32
  }
  func.func @transform_17(%arg0: i32) -> (i32, i32, i32) {
    %c0_i32 = arith.constant 0 : i32
    %c0_i32_0 = arith.constant 0 : i32
    %c0_i32_1 = arith.constant 0 : i32
    return %arg0, %c0_i32, %c0_i32_0 : i32, i32, i32
  }
  func.func @transform_18(%arg0: i32) -> (i32, i32, i32) {
    %c0_i32 = arith.constant 0 : i32
    %c0_i32_0 = arith.constant 0 : i32
    %c0_i32_1 = arith.constant 0 : i32
    return %arg0, %c0_i32, %c0_i32_0 : i32, i32, i32
  }
  func.func @transform_19(%arg0: i32) -> (i32, i32, i32) {
    %c0_i32 = arith.constant 0 : i32
    %c0_i32_0 = arith.constant 0 : i32
    %c0_i32_1 = arith.constant 0 : i32
    return %arg0, %c0_i32, %c0_i32_0 : i32, i32, i32
  }
  func.func @transform_20(%arg0: i32) -> (i32, i32, i32) {
    %c0_i32 = arith.constant 0 : i32
    %c0_i32_0 = arith.constant 0 : i32
    %c0_i32_1 = arith.constant 0 : i32
    return %arg0, %c0_i32, %c0_i32_0 : i32, i32, i32
  }
  func.func @transform_21(%arg0: i32) -> (i32, i32) {
    %c0_i32 = arith.constant 0 : i32
    %c0_i32_0 = arith.constant 0 : i32
    %c0_i32_1 = arith.constant 0 : i32
    return %c0_i32, %c0_i32_0 : i32, i32
  }
}

</mosaic_0001>

<llo_original>
// kernel: tpu_custom_call.1
$region0: #{tpu_custom_call.1}
  #allocation0 [shape = 'u32[]', space=smem, size = 0x4, offset = 0x4, fixed_abs, tag = 'smem constant byte address 0x4 - core index']
  #allocation1 [shape = 'u32[72,128]{1,0:T(1,128)}', space=vmem, size = 0x9000, scoped, tag = 'internal scratch']
  #allocation2 [shape = 'f32[32,32]{1,0:T(8,128)}', space=vmem, size = 0x4000, scoped, tag = 'scratch operand']
  %s0 = inlined_call_operand.vmem [shape: f32[32,32], index: 0, kind: input, shape index: {}]
  %s1 = inlined_call_operand.vmem [shape: f32[4,1,16], index: 1, kind: input, shape index: {}]
  %s2 = inlined_call_operand.vmem [shape: f32[4,32,128], index: 2, kind: input, shape index: {}]
  %s3 = inlined_call_operand.vmem [shape: f32[1,32], index: 3, kind: input, shape index: {}]
  %s4 = inlined_call_operand.vmem [shape: f32[1,32], index: 4, kind: input, shape index: {}]
  %s5 = inlined_call_operand.vmem [shape: f32[2,2,32,16], index: 5, kind: input, shape index: {}]
  %s6 = inlined_call_operand.vmem [shape: f32[2,2,1,16], index: 6, kind: input, shape index: {}]
  %s7 = inlined_call_operand.vmem [shape: f32[2,2,32,16], index: 7, kind: input, shape index: {}]
  %s8 = inlined_call_operand.vmem [shape: f32[2,2,1,16], index: 8, kind: input, shape index: {}]
  %s9 = inlined_call_operand.vmem [shape: f32[2,2,32,16], index: 9, kind: input, shape index: {}]
  %s10 = inlined_call_operand.vmem [shape: f32[2,2,1,16], index: 10, kind: input, shape index: {}]
  %s11 = inlined_call_operand.vmem [shape: f32[2,2,16,32], index: 11, kind: input, shape index: {}]
  %s12 = inlined_call_operand.vmem [shape: f32[2,1,32], index: 12, kind: input, shape index: {}]
  %s13 = inlined_call_operand.vmem [shape: f32[2,1,32], index: 13, kind: input, shape index: {}]
  %s14 = inlined_call_operand.vmem [shape: f32[2,1,32], index: 14, kind: input, shape index: {}]
  %s15 = inlined_call_operand.vmem [shape: f32[2,32,64], index: 15, kind: input, shape index: {}]
  %s16 = inlined_call_operand.vmem [shape: f32[2,1,64], index: 16, kind: input, shape index: {}]
  %s17 = inlined_call_operand.vmem [shape: f32[2,64,32], index: 17, kind: input, shape index: {}]
  %s18 = inlined_call_operand.vmem [shape: f32[2,1,32], index: 18, kind: input, shape index: {}]
  %s19 = inlined_call_operand.vmem [shape: f32[2,1,32], index: 19, kind: input, shape index: {}]
  %s20 = inlined_call_operand.vmem [shape: f32[2,1,32], index: 20, kind: input, shape index: {}]
  %s21 = inlined_call_operand.hbm [shape: f32[8,128], index: 21, kind: output, shape index: {}]
  %s22 = sld [smem:[#allocation0]]
  $region125: #{tpu_custom_call.1} parent=0
    _
  %s24 = ssub.s32 1, %s22
  %s25 = scalar_select 0, %s24, %s22
  $region1: #{tpu_custom_call.1} parent=0
    #allocation3 [shape = 'u8[4096]{0}', space=vmem, size = 0x1000, scoped, tag = 'output window, operand 0, single buffered']
    #allocation4 [shape = 's32[2]{0}', space=sflag, size = 0x8, scoped, tag = 'scoped memory for tpu_custom_call.1']
    %26 = vsyncpa [#allocation4], 0
    loop: start=0, step=1, limit=4
    $region2: #{tpu_custom_call.1} parent=1 // loop_pre_header
      _
    $region3: #{tpu_custom_call.1} parent=1 // loop_header
      %s28 = sphi 0, %s32
      %p29 = scmp.ge.s32.totalorder %s28, 4
      %s36 = sphi 0, %s36
      %s38 = sphi 0, %s36
      %s39 = sphi 0, %s38
      %s53 = sphi 0, %s39
      %s57 = sphi 0, %s57
      %s59 = sphi 0, %s57
      %s60 = sphi 0, %s59
      %s74 = sphi 0, %s60
      %s78 = sphi 0, %s78
      %s80 = sphi 0, %s78
      %s81 = sphi 0, %s80
      %s95 = sphi 0, %s81
      %s99 = sphi 0, %s99
      %s101 = sphi 0, %s99
      %s102 = sphi 0, %s101
      %s116 = sphi 0, %s102
      %s120 = sphi 0, %s120
      %s122 = sphi 0, %s120
      %s123 = sphi 0, %s122
      %s137 = sphi 0, %s123
      %s143 = sphi 0, %s145
      %s146 = sphi 0, %s143
      %s147 = sphi 0, %s146
      %s163 = sphi 0, %s147
      %s169 = sphi 0, %s171
      %s172 = sphi 0, %s169
      %s173 = sphi 0, %s172
      %s189 = sphi 0, %s173
      %s195 = sphi 0, %s197
      %s198 = sphi 0, %s195
      %s199 = sphi 0, %s198
      %s215 = sphi 0, %s199
      %s221 = sphi 0, %s223
      %s224 = sphi 0, %s221
      %s225 = sphi 0, %s224
      %s241 = sphi 0, %s225
      %s247 = sphi 0, %s249
      %s250 = sphi 0, %s247
      %s251 = sphi 0, %s250
      %s267 = sphi 0, %s251
      %s273 = sphi 0, %s275
      %s276 = sphi 0, %s273
      %s277 = sphi 0, %s276
      %s293 = sphi 0, %s277
      %s299 = sphi 0, %s301
      %s302 = sphi 0, %s299
      %s303 = sphi 0, %s302
      %s319 = sphi 0, %s303
      %s325 = sphi 0, %s327
      %s328 = sphi 0, %s325
      %s329 = sphi 0, %s328
      %s345 = sphi 0, %s329
      %s351 = sphi 0, %s353
      %s354 = sphi 0, %s351
      %s355 = sphi 0, %s354
      %s371 = sphi 0, %s355
      %s377 = sphi 0, %s379
      %s380 = sphi 0, %s377
      %s381 = sphi 0, %s380
      %s397 = sphi 0, %s381
      %s403 = sphi 0, %s405
      %s406 = sphi 0, %s403
      %s407 = sphi 0, %s406
      %s423 = sphi 0, %s407
      %s429 = sphi 0, %s431
      %s432 = sphi 0, %s429
      %s433 = sphi 0, %s432
      %s449 = sphi 0, %s433
      %s455 = sphi 0, %s457
      %s458 = sphi 0, %s455
      %s459 = sphi 0, %s458
      %s475 = sphi 0, %s459
      %s481 = sphi 0, %s483
      %s484 = sphi 0, %s481
      %s485 = sphi 0, %s484
      %s501 = sphi 0, %s485
      %s507 = sphi 0, %s509
      %s510 = sphi 0, %s507
      %s511 = sphi 0, %s510
      %s527 = sphi 0, %s511
      %s533 = sphi 0, %s535
      %s536 = sphi 0, %s533
      %s537 = sphi 0, %s536
      %s553 = sphi 0, %s537
      %s557 = sphi 0, %s557
      %s559 = sphi 0, %s557
      %s560 = sphi 0, %s559
      %s574 = sphi 0, %s560
    $region4: #{tpu_custom_call.1} parent=1 // loop_header_branch
      %31 = sbr.rel (%p29) target = $region8
    $region5: #{tpu_custom_call.1} parent=1 // loop_body
      %s33 = ssub.s32 %s28, 1
      %s34 = ssub.s32 %s28, 2
      %s35 = sadd.s32 %s28, 1
      %s37 = sadd.s32 %s36, 1
      %p40 = scmp.eq.s32.totalorder %s28, 1
      %p41 = scmp.ne.s32.totalorder %s36, %s38
      %p42 = scmp.eq.s32.totalorder %s28, 0
      %p43 = por %p41, %p42
      %p44 = scmp.ne.s32.totalorder %s36, %s38
      %p45 = scmp.eq.s32.totalorder %s33, 1
      %p46 = por %p44, %p45
      %p47 = scmp.ne.s32.totalorder %s38, %s39
      %p48 = scmp.eq.s32.totalorder %s33, 0
      %p49 = por %p47, %p48
      %p50 = scmp.ne.s32.totalorder %s38, %s39
      %p51 = scmp.eq.s32.totalorder %s34, 1
      %p52 = por %p50, %p51
      %p54 = scmp.ne.s32.totalorder %s39, %s53
      %p55 = scmp.eq.s32.totalorder %s34, 0
      %p56 = por %p54, %p55
      %s58 = sadd.s32 %s57, 1
      %p61 = scmp.eq.s32.totalorder %s28, 1
      %p62 = scmp.ne.s32.totalorder %s57, %s59
      %p63 = scmp.eq.s32.totalorder %s28, 0
      %p64 = por %p62, %p63
      %p65 = scmp.ne.s32.totalorder %s57, %s59
      %p66 = scmp.eq.s32.totalorder %s33, 1
      %p67 = por %p65, %p66
      %p68 = scmp.ne.s32.totalorder %s59, %s60
      %p69 = scmp.eq.s32.totalorder %s33, 0
      %p70 = por %p68, %p69
      %p71 = scmp.ne.s32.totalorder %s59, %s60
      %p72 = scmp.eq.s32.totalorder %s34, 1
      %p73 = por %p71, %p72
      %p75 = scmp.ne.s32.totalorder %s60, %s74
      %p76 = scmp.eq.s32.totalorder %s34, 0
      %p77 = por %p75, %p76
      %s79 = sadd.s32 %s78, 1
      %p82 = scmp.eq.s32.totalorder %s28, 1
      %p83 = scmp.ne.s32.totalorder %s78, %s80
      %p84 = scmp.eq.s32.totalorder %s28, 0
      %p85 = por %p83, %p84
      %p86 = scmp.ne.s32.totalorder %s78, %s80
      %p87 = scmp.eq.s32.totalorder %s33, 1
      %p88 = por %p86, %p87
      %p89 = scmp.ne.s32.totalorder %s80, %s81
      %p90 = scmp.eq.s32.totalorder %s33, 0
      %p91 = por %p89, %p90
      %p92 = scmp.ne.s32.totalorder %s80, %s81
      %p93 = scmp.eq.s32.totalorder %s34, 1
      %p94 = por %p92, %p93
      %p96 = scmp.ne.s32.totalorder %s81, %s95
      %p97 = scmp.eq.s32.totalorder %s34, 0
      %p98 = por %p96, %p97
      %s100 = sadd.s32 %s99, 1
      %p103 = scmp.eq.s32.totalorder %s28, 1
      %p104 = scmp.ne.s32.totalorder %s99, %s101
      %p105 = scmp.eq.s32.totalorder %s28, 0
      %p106 = por %p104, %p105
      %p107 = scmp.ne.s32.totalorder %s99, %s101
      %p108 = scmp.eq.s32.totalorder %s33, 1
      %p109 = por %p107, %p108
      %p110 = scmp.ne.s32.totalorder %s101, %s102
      %p111 = scmp.eq.s32.totalorder %s33, 0
      %p112 = por %p110, %p111
      %p113 = scmp.ne.s32.totalorder %s101, %s102
      %p114 = scmp.eq.s32.totalorder %s34, 1
      %p115 = por %p113, %p114
      %p117 = scmp.ne.s32.totalorder %s102, %s116
      %p118 = scmp.eq.s32.totalorder %s34, 0
      %p119 = por %p117, %p118
      %s121 = sadd.s32 %s120, 1
      %p124 = scmp.eq.s32.totalorder %s28, 1
      %p125 = scmp.ne.s32.totalorder %s120, %s122
      %p126 = scmp.eq.s32.totalorder %s28, 0
      %p127 = por %p125, %p126
      %p128 = scmp.ne.s32.totalorder %s120, %s122
      %p129 = scmp.eq.s32.totalorder %s33, 1
      %p130 = por %p128, %p129
      %p131 = scmp.ne.s32.totalorder %s122, %s123
      %p132 = scmp.eq.s32.totalorder %s33, 0
      %p133 = por %p131, %p132
      %p134 = scmp.ne.s32.totalorder %s122, %s123
      %p135 = scmp.eq.s32.totalorder %s34, 1
      %p136 = por %p134, %p135
      %p138 = scmp.ne.s32.totalorder %s123, %s137
      %p139 = scmp.eq.s32.totalorder %s34, 0
      %p140 = por %p138, %p139
      %s141 = ssub.s32 %s28, %s35
      %p142 = scmp.eq.s32.totalorder %s141, 0
      %s144 = sadd.s32 %s143, 1
      %s145 = scalar_select %p142, %s143, %s144
      %p148 = pneg %p142
      %p149 = scmp.eq.s32.totalorder %s28, 1
      %p150 = por %p148, %p149
      %p151 = scmp.ne.s32.totalorder %s143, %s146
      %p152 = scmp.eq.s32.totalorder %s28, 0
      %p153 = por %p151, %p152
      %p154 = scmp.ne.s32.totalorder %s143, %s146
      %p155 = scmp.eq.s32.totalorder %s33, 1
      %p156 = por %p154, %p155
      %p157 = scmp.ne.s32.totalorder %s146, %s147
      %p158 = scmp.eq.s32.totalorder %s33, 0
      %p159 = por %p157, %p158
      %p160 = scmp.ne.s32.totalorder %s146, %s147
      %p161 = scmp.eq.s32.totalorder %s34, 1
      %p162 = por %p160, %p161
      %p164 = scmp.ne.s32.totalorder %s147, %s163
      %p165 = scmp.eq.s32.totalorder %s34, 0
      %p166 = por %p164, %p165
      %s167 = ssub.s32 %s28, %s35
      %p168 = scmp.eq.s32.totalorder %s167, 0
      %s170 = sadd.s32 %s169, 1
      %s171 = scalar_select %p168, %s169, %s170
      %p174 = pneg %p168
      %p175 = scmp.eq.s32.totalorder %s28, 1
      %p176 = por %p174, %p175
      %p177 = scmp.ne.s32.totalorder %s169, %s172
      %p178 = scmp.eq.s32.totalorder %s28, 0
      %p179 = por %p177, %p178
      %p180 = scmp.ne.s32.totalorder %s169, %s172
      %p181 = scmp.eq.s32.totalorder %s33, 1
      %p182 = por %p180, %p181
      %p183 = scmp.ne.s32.totalorder %s172, %s173
      %p184 = scmp.eq.s32.totalorder %s33, 0
      %p185 = por %p183, %p184
      %p186 = scmp.ne.s32.totalorder %s172, %s173
      %p187 = scmp.eq.s32.totalorder %s34, 1
      %p188 = por %p186, %p187
      %p190 = scmp.ne.s32.totalorder %s173, %s189
      %p191 = scmp.eq.s32.totalorder %s34, 0
      %p192 = por %p190, %p191
      %s193 = ssub.s32 %s28, %s35
      %p194 = scmp.eq.s32.totalorder %s193, 0
      %s196 = sadd.s32 %s195, 1
      %s197 = scalar_select %p194, %s195, %s196
      %p200 = pneg %p194
      %p201 = scmp.eq.s32.totalorder %s28, 1
      %p202 = por %p200, %p201
      %p203 = scmp.ne.s32.totalorder %s195, %s198
      %p204 = scmp.eq.s32.totalorder %s28, 0
      %p205 = por %p203, %p204
      %p206 = scmp.ne.s32.totalorder %s195, %s198
      %p207 = scmp.eq.s32.totalorder %s33, 1
      %p208 = por %p206, %p207
      %p209 = scmp.ne.s32.totalorder %s198, %s199
      %p210 = scmp.eq.s32.totalorder %s33, 0
      %p211 = por %p209, %p210
      %p212 = scmp.ne.s32.totalorder %s198, %s199
      %p213 = scmp.eq.s32.totalorder %s34, 1
      %p214 = por %p212, %p213
      %p216 = scmp.ne.s32.totalorder %s199, %s215
      %p217 = scmp.eq.s32.totalorder %s34, 0
      %p218 = por %p216, %p217
      %s219 = ssub.s32 %s28, %s35
      %p220 = scmp.eq.s32.totalorder %s219, 0
      %s222 = sadd.s32 %s221, 1
      %s223 = scalar_select %p220, %s221, %s222
      %p226 = pneg %p220
      %p227 = scmp.eq.s32.totalorder %s28, 1
      %p228 = por %p226, %p227
      %p229 = scmp.ne.s32.totalorder %s221, %s224
      %p230 = scmp.eq.s32.totalorder %s28, 0
      %p231 = por %p229, %p230
      %p232 = scmp.ne.s32.totalorder %s221, %s224
      %p233 = scmp.eq.s32.totalorder %s33, 1
      %p234 = por %p232, %p233
      %p235 = scmp.ne.s32.totalorder %s224, %s225
      %p236 = scmp.eq.s32.totalorder %s33, 0
      %p237 = por %p235, %p236
      %p238 = scmp.ne.s32.totalorder %s224, %s225
      %p239 = scmp.eq.s32.totalorder %s34, 1
      %p240 = por %p238, %p239
      %p242 = scmp.ne.s32.totalorder %s225, %s241
      %p243 = scmp.eq.s32.totalorder %s34, 0
      %p244 = por %p242, %p243
      %s245 = ssub.s32 %s28, %s35
      %p246 = scmp.eq.s32.totalorder %s245, 0
      %s248 = sadd.s32 %s247, 1
      %s249 = scalar_select %p246, %s247, %s248
      %p252 = pneg %p246
      %p253 = scmp.eq.s32.totalorder %s28, 1
      %p254 = por %p252, %p253
      %p255 = scmp.ne.s32.totalorder %s247, %s250
      %p256 = scmp.eq.s32.totalorder %s28, 0
      %p257 = por %p255, %p256
      %p258 = scmp.ne.s32.totalorder %s247, %s250
      %p259 = scmp.eq.s32.totalorder %s33, 1
      %p260 = por %p258, %p259
      %p261 = scmp.ne.s32.totalorder %s250, %s251
      %p262 = scmp.eq.s32.totalorder %s33, 0
      %p263 = por %p261, %p262
      %p264 = scmp.ne.s32.totalorder %s250, %s251
      %p265 = scmp.eq.s32.totalorder %s34, 1
      %p266 = por %p264, %p265
      %p268 = scmp.ne.s32.totalorder %s251, %s267
      %p269 = scmp.eq.s32.totalorder %s34, 0
      %p270 = por %p268, %p269
      %s271 = ssub.s32 %s28, %s35
      %p272 = scmp.eq.s32.totalorder %s271, 0
      %s274 = sadd.s32 %s273, 1
      %s275 = scalar_select %p272, %s273, %s274
      %p278 = pneg %p272
      %p279 = scmp.eq.s32.totalorder %s28, 1
      %p280 = por %p278, %p279
      %p281 = scmp.ne.s32.totalorder %s273, %s276
      %p282 = scmp.eq.s32.totalorder %s28, 0
      %p283 = por %p281, %p282
      %p284 = scmp.ne.s32.totalorder %s273, %s276
      %p285 = scmp.eq.s32.totalorder %s33, 1
      %p286 = por %p284, %p285
      %p287 = scmp.ne.s32.totalorder %s276, %s277
      %p288 = scmp.eq.s32.totalorder %s33, 0
      %p289 = por %p287, %p288
      %p290 = scmp.ne.s32.totalorder %s276, %s277
      %p291 = scmp.eq.s32.totalorder %s34, 1
      %p292 = por %p290, %p291
      %p294 = scmp.ne.s32.totalorder %s277, %s293
      %p295 = scmp.eq.s32.totalorder %s34, 0
      %p296 = por %p294, %p295
      %s297 = ssub.s32 %s28, %s35
      %p298 = scmp.eq.s32.totalorder %s297, 0
      %s300 = sadd.s32 %s299, 1
      %s301 = scalar_select %p298, %s299, %s300
      %p304 = pneg %p298
      %p305 = scmp.eq.s32.totalorder %s28, 1
      %p306 = por %p304, %p305
      %p307 = scmp.ne.s32.totalorder %s299, %s302
      %p308 = scmp.eq.s32.totalorder %s28, 0
      %p309 = por %p307, %p308
      %p310 = scmp.ne.s32.totalorder %s299, %s302
      %p311 = scmp.eq.s32.totalorder %s33, 1
      %p312 = por %p310, %p311
      %p313 = scmp.ne.s32.totalorder %s302, %s303
      %p314 = scmp.eq.s32.totalorder %s33, 0
      %p315 = por %p313, %p314
      %p316 = scmp.ne.s32.totalorder %s302, %s303
      %p317 = scmp.eq.s32.totalorder %s34, 1
      %p318 = por %p316, %p317
      %p320 = scmp.ne.s32.totalorder %s303, %s319
      %p321 = scmp.eq.s32.totalorder %s34, 0
      %p322 = por %p320, %p321
      %s323 = ssub.s32 %s28, %s35
      %p324 = scmp.eq.s32.totalorder %s323, 0
      %s326 = sadd.s32 %s325, 1
      %s327 = scalar_select %p324, %s325, %s326
      %p330 = pneg %p324
      %p331 = scmp.eq.s32.totalorder %s28, 1
      %p332 = por %p330, %p331
      %p333 = scmp.ne.s32.totalorder %s325, %s328
      %p334 = scmp.eq.s32.totalorder %s28, 0
      %p335 = por %p333, %p334
      %p336 = scmp.ne.s32.totalorder %s325, %s328
      %p337 = scmp.eq.s32.totalorder %s33, 1
      %p338 = por %p336, %p337
      %p339 = scmp.ne.s32.totalorder %s328, %s329
      %p340 = scmp.eq.s32.totalorder %s33, 0
      %p341 = por %p339, %p340
      %p342 = scmp.ne.s32.totalorder %s328, %s329
      %p343 = scmp.eq.s32.totalorder %s34, 1
      %p344 = por %p342, %p343
      %p346 = scmp.ne.s32.totalorder %s329, %s345
      %p347 = scmp.eq.s32.totalorder %s34, 0
      %p348 = por %p346, %p347
      %s349 = ssub.s32 %s28, %s35
      %p350 = scmp.eq.s32.totalorder %s349, 0
      %s352 = sadd.s32 %s351, 1
      %s353 = scalar_select %p350, %s351, %s352
      %p356 = pneg %p350
      %p357 = scmp.eq.s32.totalorder %s28, 1
      %p358 = por %p356, %p357
      %p359 = scmp.ne.s32.totalorder %s351, %s354
      %p360 = scmp.eq.s32.totalorder %s28, 0
      %p361 = por %p359, %p360
      %p362 = scmp.ne.s32.totalorder %s351, %s354
      %p363 = scmp.eq.s32.totalorder %s33, 1
      %p364 = por %p362, %p363
      %p365 = scmp.ne.s32.totalorder %s354, %s355
      %p366 = scmp.eq.s32.totalorder %s33, 0
      %p367 = por %p365, %p366
      %p368 = scmp.ne.s32.totalorder %s354, %s355
      %p369 = scmp.eq.s32.totalorder %s34, 1
      %p370 = por %p368, %p369
      %p372 = scmp.ne.s32.totalorder %s355, %s371
      %p373 = scmp.eq.s32.totalorder %s34, 0
      %p374 = por %p372, %p373
      %s375 = ssub.s32 %s28, %s35
      %p376 = scmp.eq.s32.totalorder %s375, 0
      %s378 = sadd.s32 %s377, 1
      %s379 = scalar_select %p376, %s377, %s378
      %p382 = pneg %p376
      %p383 = scmp.eq.s32.totalorder %s28, 1
      %p384 = por %p382, %p383
      %p385 = scmp.ne.s32.totalorder %s377, %s380
      %p386 = scmp.eq.s32.totalorder %s28, 0
      %p387 = por %p385, %p386
      %p388 = scmp.ne.s32.totalorder %s377, %s380
      %p389 = scmp.eq.s32.totalorder %s33, 1
      %p390 = por %p388, %p389
      %p391 = scmp.ne.s32.totalorder %s380, %s381
      %p392 = scmp.eq.s32.totalorder %s33, 0
      %p393 = por %p391, %p392
      %p394 = scmp.ne.s32.totalorder %s380, %s381
      %p395 = scmp.eq.s32.totalorder %s34, 1
      %p396 = por %p394, %p395
      %p398 = scmp.ne.s32.totalorder %s381, %s397
      %p399 = scmp.eq.s32.totalorder %s34, 0
      %p400 = por %p398, %p399
      %s401 = ssub.s32 %s28, %s35
      %p402 = scmp.eq.s32.totalorder %s401, 0
      %s404 = sadd.s32 %s403, 1
      %s405 = scalar_select %p402, %s403, %s404
      %p408 = pneg %p402
      %p409 = scmp.eq.s32.totalorder %s28, 1
      %p410 = por %p408, %p409
      %p411 = scmp.ne.s32.totalorder %s403, %s406
      %p412 = scmp.eq.s32.totalorder %s28, 0
      %p413 = por %p411, %p412
      %p414 = scmp.ne.s32.totalorder %s403, %s406
      %p415 = scmp.eq.s32.totalorder %s33, 1
      %p416 = por %p414, %p415
      %p417 = scmp.ne.s32.totalorder %s406, %s407
      %p418 = scmp.eq.s32.totalorder %s33, 0
      %p419 = por %p417, %p418
      %p420 = scmp.ne.s32.totalorder %s406, %s407
      %p421 = scmp.eq.s32.totalorder %s34, 1
      %p422 = por %p420, %p421
      %p424 = scmp.ne.s32.totalorder %s407, %s423
      %p425 = scmp.eq.s32.totalorder %s34, 0
      %p426 = por %p424, %p425
      %s427 = ssub.s32 %s28, %s35
      %p428 = scmp.eq.s32.totalorder %s427, 0
      %s430 = sadd.s32 %s429, 1
      %s431 = scalar_select %p428, %s429, %s430
      %p434 = pneg %p428
      %p435 = scmp.eq.s32.totalorder %s28, 1
      %p436 = por %p434, %p435
      %p437 = scmp.ne.s32.totalorder %s429, %s432
      %p438 = scmp.eq.s32.totalorder %s28, 0
      %p439 = por %p437, %p438
      %p440 = scmp.ne.s32.totalorder %s429, %s432
      %p441 = scmp.eq.s32.totalorder %s33, 1
      %p442 = por %p440, %p441
      %p443 = scmp.ne.s32.totalorder %s432, %s433
      %p444 = scmp.eq.s32.totalorder %s33, 0
      %p445 = por %p443, %p444
      %p446 = scmp.ne.s32.totalorder %s432, %s433
      %p447 = scmp.eq.s32.totalorder %s34, 1
      %p448 = por %p446, %p447
      %p450 = scmp.ne.s32.totalorder %s433, %s449
      %p451 = scmp.eq.s32.totalorder %s34, 0
      %p452 = por %p450, %p451
      %s453 = ssub.s32 %s28, %s35
      %p454 = scmp.eq.s32.totalorder %s453, 0
      %s456 = sadd.s32 %s455, 1
      %s457 = scalar_select %p454, %s455, %s456
      %p460 = pneg %p454
      %p461 = scmp.eq.s32.totalorder %s28, 1
      %p462 = por %p460, %p461
      %p463 = scmp.ne.s32.totalorder %s455, %s458
      %p464 = scmp.eq.s32.totalorder %s28, 0
      %p465 = por %p463, %p464
      %p466 = scmp.ne.s32.totalorder %s455, %s458
      %p467 = scmp.eq.s32.totalorder %s33, 1
      %p468 = por %p466, %p467
      %p469 = scmp.ne.s32.totalorder %s458, %s459
      %p470 = scmp.eq.s32.totalorder %s33, 0
      %p471 = por %p469, %p470
      %p472 = scmp.ne.s32.totalorder %s458, %s459
      %p473 = scmp.eq.s32.totalorder %s34, 1
      %p474 = por %p472, %p473
      %p476 = scmp.ne.s32.totalorder %s459, %s475
      %p477 = scmp.eq.s32.totalorder %s34, 0
      %p478 = por %p476, %p477
      %s479 = ssub.s32 %s28, %s35
      %p480 = scmp.eq.s32.totalorder %s479, 0
      %s482 = sadd.s32 %s481, 1
      %s483 = scalar_select %p480, %s481, %s482
      %p486 = pneg %p480
      %p487 = scmp.eq.s32.totalorder %s28, 1
      %p488 = por %p486, %p487
      %p489 = scmp.ne.s32.totalorder %s481, %s484
      %p490 = scmp.eq.s32.totalorder %s28, 0
      %p491 = por %p489, %p490
      %p492 = scmp.ne.s32.totalorder %s481, %s484
      %p493 = scmp.eq.s32.totalorder %s33, 1
      %p494 = por %p492, %p493
      %p495 = scmp.ne.s32.totalorder %s484, %s485
      %p496 = scmp.eq.s32.totalorder %s33, 0
      %p497 = por %p495, %p496
      %p498 = scmp.ne.s32.totalorder %s484, %s485
      %p499 = scmp.eq.s32.totalorder %s34, 1
      %p500 = por %p498, %p499
      %p502 = scmp.ne.s32.totalorder %s485, %s501
      %p503 = scmp.eq.s32.totalorder %s34, 0
      %p504 = por %p502, %p503
      %s505 = ssub.s32 %s28, %s35
      %p506 = scmp.eq.s32.totalorder %s505, 0
      %s508 = sadd.s32 %s507, 1
      %s509 = scalar_select %p506, %s507, %s508
      %p512 = pneg %p506
      %p513 = scmp.eq.s32.totalorder %s28, 1
      %p514 = por %p512, %p513
      %p515 = scmp.ne.s32.totalorder %s507, %s510
      %p516 = scmp.eq.s32.totalorder %s28, 0
      %p517 = por %p515, %p516
      %p518 = scmp.ne.s32.totalorder %s507, %s510
      %p519 = scmp.eq.s32.totalorder %s33, 1
      %p520 = por %p518, %p519
      %p521 = scmp.ne.s32.totalorder %s510, %s511
      %p522 = scmp.eq.s32.totalorder %s33, 0
      %p523 = por %p521, %p522
      %p524 = scmp.ne.s32.totalorder %s510, %s511
      %p525 = scmp.eq.s32.totalorder %s34, 1
      %p526 = por %p524, %p525
      %p528 = scmp.ne.s32.totalorder %s511, %s527
      %p529 = scmp.eq.s32.totalorder %s34, 0
      %p530 = por %p528, %p529
      %s531 = ssub.s32 %s28, %s35
      %p532 = scmp.eq.s32.totalorder %s531, 0
      %s534 = sadd.s32 %s533, 1
      %s535 = scalar_select %p532, %s533, %s534
      %p538 = pneg %p532
      %p539 = scmp.eq.s32.totalorder %s28, 1
      %p540 = por %p538, %p539
      %p541 = scmp.ne.s32.totalorder %s533, %s536
      %p542 = scmp.eq.s32.totalorder %s28, 0
      %p543 = por %p541, %p542
      %p544 = scmp.ne.s32.totalorder %s533, %s536
      %p545 = scmp.eq.s32.totalorder %s33, 1
      %p546 = por %p544, %p545
      %p547 = scmp.ne.s32.totalorder %s536, %s537
      %p548 = scmp.eq.s32.totalorder %s33, 0
      %p549 = por %p547, %p548
      %p550 = scmp.ne.s32.totalorder %s536, %s537
      %p551 = scmp.eq.s32.totalorder %s34, 1
      %p552 = por %p550, %p551
      %p554 = scmp.ne.s32.totalorder %s537, %s553
      %p555 = scmp.eq.s32.totalorder %s34, 0
      %p556 = por %p554, %p555
      %s558 = sadd.s32 %s557, 1
      %p561 = scmp.eq.s32.totalorder %s28, 1
      %p562 = scmp.ne.s32.totalorder %s557, %s559
      %p563 = scmp.eq.s32.totalorder %s28, 0
      %p564 = por %p562, %p563
      %p565 = scmp.ne.s32.totalorder %s557, %s559
      %p566 = scmp.eq.s32.totalorder %s33, 1
      %p567 = por %p565, %p566
      %p568 = scmp.ne.s32.totalorder %s559, %s560
      %p569 = scmp.eq.s32.totalorder %s33, 0
      %p570 = por %p568, %p569
      %p571 = scmp.ne.s32.totalorder %s559, %s560
      %p572 = scmp.eq.s32.totalorder %s34, 1
      %p573 = por %p571, %p572
      %p575 = scmp.ne.s32.totalorder %s560, %s574
      %p576 = scmp.eq.s32.totalorder %s34, 0
      %p577 = por %p575, %p576
      %p578 = scmp.le.s32.totalorder 1, %s28
      %p579 = scmp.lt.s32.totalorder %s28, 3
      %p580 = pnand %p578, %p579
      %p581 = pneg %p580
      // Predicated region
      $region9: #{tpu_custom_call.1} parent=5 // pred_check
        _
      $region10: #{tpu_custom_call.1} parent=5 // pred_check_branch
        %583 = sbr.rel (%p580) target = $region12
      $region11: #{tpu_custom_call.1} parent=5 // pred_region
        %s584 = ssub.s32 %s28, 1
        // Predicated region
        $region13: #{tpu_custom_call.1} parent=11 // pred_check
          %p585 = pneg %p49
        $region14: #{tpu_custom_call.1} parent=11 // pred_check_branch
          %587 = sbr.rel (%p585) target = $region16
        $region15: #{tpu_custom_call.1} parent=11 // pred_region
          _
        $region16: #{tpu_custom_call.1} parent=11 // pred_fallthru
          _
        // Predicated region
        $region17: #{tpu_custom_call.1} parent=11 // pred_check
          %p588 = pneg %p70
        $region18: #{tpu_custom_call.1} parent=11 // pred_check_branch
          %590 = sbr.rel (%p588) target = $region20
        $region19: #{tpu_custom_call.1} parent=11 // pred_region
          _
        $region20: #{tpu_custom_call.1} parent=11 // pred_fallthru
          _
        // Predicated region
        $region21: #{tpu_custom_call.1} parent=11 // pred_check
          %p591 = pneg %p91
        $region22: #{tpu_custom_call.1} parent=11 // pred_check_branch
          %593 = sbr.rel (%p591) target = $region24
        $region23: #{tpu_custom_call.1} parent=11 // pred_region
          _
        $region24: #{tpu_custom_call.1} parent=11 // pred_fallthru
          _
        // Predicated region
        $region25: #{tpu_custom_call.1} parent=11 // pred_check
          %p594 = pneg %p112
        $region26: #{tpu_custom_call.1} parent=11 // pred_check_branch
          %596 = sbr.rel (%p594) target = $region28
        $region27: #{tpu_custom_call.1} parent=11 // pred_region
          _
        $region28: #{tpu_custom_call.1} parent=11 // pred_fallthru
          _
        // Predicated region
        $region29: #{tpu_custom_call.1} parent=11 // pred_check
          %p597 = pneg %p133
        $region30: #{tpu_custom_call.1} parent=11 // pred_check_branch
          %599 = sbr.rel (%p597) target = $region32
        $region31: #{tpu_custom_call.1} parent=11 // pred_region
          _
        $region32: #{tpu_custom_call.1} parent=11 // pred_fallthru
          _
      $region12: #{tpu_custom_call.1} parent=5 // pred_fallthru
        _
      %p600 = scmp.lt.s32.totalorder %s28, 2
      // Predicated region
      $region33: #{tpu_custom_call.1} parent=5 // pred_check
        %p601 = pneg %p600
      $region34: #{tpu_custom_call.1} parent=5 // pred_check_branch
        %603 = sbr.rel (%p601) target = $region36
      $region35: #{tpu_custom_call.1} parent=5 // pred_region
        // Predicated region
        $region37: #{tpu_custom_call.1} parent=35 // pred_check
          %p604 = pneg %p153
        $region38: #{tpu_custom_call.1} parent=35 // pred_check_branch
          %606 = sbr.rel (%p604) target = $region40
        $region39: #{tpu_custom_call.1} parent=35 // pred_region
          %p607 = scmp.lt.s32.totalorder %s28, 1
          %s608 = scalar_select %p607, %s28, 1
          %s609 = smul.addr %s608, 8
          %s610 = smul.addr %s609, 8
          %s611 = scalar_lea.vmem %s5, %s610
        $region40: #{tpu_custom_call.1} parent=35 // pred_fallthru
          _
        // Predicated region
        $region41: #{tpu_custom_call.1} parent=35 // pred_check
          %p612 = pneg %p179
        $region42: #{tpu_custom_call.1} parent=35 // pred_check_branch
          %614 = sbr.rel (%p612) target = $region44
        $region43: #{tpu_custom_call.1} parent=35 // pred_region
          %p615 = scmp.lt.s32.totalorder %s28, 1
          %s616 = scalar_select %p615, %s28, 1
          %s617 = smul.addr %s616, 2
          %s618 = scalar_lea.vmem %s6, %s617
        $region44: #{tpu_custom_call.1} parent=35 // pred_fallthru
          _
        // Predicated region
        $region45: #{tpu_custom_call.1} parent=35 // pred_check
          %p619 = pneg %p205
        $region46: #{tpu_custom_call.1} parent=35 // pred_check_branch
          %621 = sbr.rel (%p619) target = $region48
        $region47: #{tpu_custom_call.1} parent=35 // pred_region
          %p622 = scmp.lt.s32.totalorder %s28, 1
          %s623 = scalar_select %p622, %s28, 1
          %s624 = smul.addr %s623, 8
          %s625 = smul.addr %s624, 8
          %s626 = scalar_lea.vmem %s7, %s625
        $region48: #{tpu_custom_call.1} parent=35 // pred_fallthru
          _
        // Predicated region
        $region49: #{tpu_custom_call.1} parent=35 // pred_check
          %p627 = pneg %p231
        $region50: #{tpu_custom_call.1} parent=35 // pred_check_branch
          %629 = sbr.rel (%p627) target = $region52
        $region51: #{tpu_custom_call.1} parent=35 // pred_region
          %p630 = scmp.lt.s32.totalorder %s28, 1
          %s631 = scalar_select %p630, %s28, 1
          %s632 = smul.addr %s631, 2
          %s633 = scalar_lea.vmem %s8, %s632
        $region52: #{tpu_custom_call.1} parent=35 // pred_fallthru
          _
        // Predicated region
        $region53: #{tpu_custom_call.1} parent=35 // pred_check
          %p634 = pneg %p257
        $region54: #{tpu_custom_call.1} parent=35 // pred_check_branch
          %636 = sbr.rel (%p634) target = $region56
        $region55: #{tpu_custom_call.1} parent=35 // pred_region
          %p637 = scmp.lt.s32.totalorder %s28, 1
          %s638 = scalar_select %p637, %s28, 1
          %s639 = smul.addr %s638, 8
          %s640 = smul.addr %s639, 8
          %s641 = scalar_lea.vmem %s9, %s640
        $region56: #{tpu_custom_call.1} parent=35 // pred_fallthru
          _
        // Predicated region
        $region57: #{tpu_custom_call.1} parent=35 // pred_check
          %p642 = pneg %p283
        $region58: #{tpu_custom_call.1} parent=35 // pred_check_branch
          %644 = sbr.rel (%p642) target = $region60
        $region59: #{tpu_custom_call.1} parent=35 // pred_region
          %p645 = scmp.lt.s32.totalorder %s28, 1
          %s646 = scalar_select %p645, %s28, 1
          %s647 = smul.addr %s646, 2
          %s648 = scalar_lea.vmem %s10, %s647
        $region60: #{tpu_custom_call.1} parent=35 // pred_fallthru
          _
        // Predicated region
        $region61: #{tpu_custom_call.1} parent=35 // pred_check
          %p649 = pneg %p309
        $region62: #{tpu_custom_call.1} parent=35 // pred_check_branch
          %651 = sbr.rel (%p649) target = $region64
        $region63: #{tpu_custom_call.1} parent=35 // pred_region
          %p652 = scmp.lt.s32.totalorder %s28, 1
          %s653 = scalar_select %p652, %s28, 1
          %s654 = smul.addr %s653, 4
          %s655 = smul.addr %s654, 8
          %s656 = scalar_lea.vmem %s11, %s655
        $region64: #{tpu_custom_call.1} parent=35 // pred_fallthru
          _
        // Predicated region
        $region65: #{tpu_custom_call.1} parent=35 // pred_check
          %p657 = pneg %p335
        $region66: #{tpu_custom_call.1} parent=35 // pred_check_branch
          %659 = sbr.rel (%p657) target = $region68
        $region67: #{tpu_custom_call.1} parent=35 // pred_region
          %p660 = scmp.lt.s32.totalorder %s28, 1
          %s661 = scalar_select %p660, %s28, 1
          %s662 = scalar_lea.vmem %s12, %s661
        $region68: #{tpu_custom_call.1} parent=35 // pred_fallthru
          _
        // Predicated region
        $region69: #{tpu_custom_call.1} parent=35 // pred_check
          %p663 = pneg %p361
        $region70: #{tpu_custom_call.1} parent=35 // pred_check_branch
          %665 = sbr.rel (%p663) target = $region72
        $region71: #{tpu_custom_call.1} parent=35 // pred_region
          %p666 = scmp.lt.s32.totalorder %s28, 1
          %s667 = scalar_select %p666, %s28, 1
          %s668 = scalar_lea.vmem %s13, %s667
        $region72: #{tpu_custom_call.1} parent=35 // pred_fallthru
          _
        // Predicated region
        $region73: #{tpu_custom_call.1} parent=35 // pred_check
          %p669 = pneg %p387
        $region74: #{tpu_custom_call.1} parent=35 // pred_check_branch
          %671 = sbr.rel (%p669) target = $region76
        $region75: #{tpu_custom_call.1} parent=35 // pred_region
          %p672 = scmp.lt.s32.totalorder %s28, 1
          %s673 = scalar_select %p672, %s28, 1
          %s674 = scalar_lea.vmem %s14, %s673
        $region76: #{tpu_custom_call.1} parent=35 // pred_fallthru
          _
        // Predicated region
        $region77: #{tpu_custom_call.1} parent=35 // pred_check
          %p675 = pneg %p413
        $region78: #{tpu_custom_call.1} parent=35 // pred_check_branch
          %677 = sbr.rel (%p675) target = $region80
        $region79: #{tpu_custom_call.1} parent=35 // pred_region
          %p678 = scmp.lt.s32.totalorder %s28, 1
          %s679 = scalar_select %p678, %s28, 1
          %s680 = smul.addr %s679, 4
          %s681 = smul.addr %s680, 8
          %s682 = scalar_lea.vmem %s15, %s681
        $region80: #{tpu_custom_call.1} parent=35 // pred_fallthru
          _
        // Predicated region
        $region81: #{tpu_custom_call.1} parent=35 // pred_check
          %p683 = pneg %p439
        $region82: #{tpu_custom_call.1} parent=35 // pred_check_branch
          %685 = sbr.rel (%p683) target = $region84
        $region83: #{tpu_custom_call.1} parent=35 // pred_region
          %p686 = scmp.lt.s32.totalorder %s28, 1
          %s687 = scalar_select %p686, %s28, 1
          %s688 = scalar_lea.vmem %s16, %s687
        $region84: #{tpu_custom_call.1} parent=35 // pred_fallthru
          _
        // Predicated region
        $region85: #{tpu_custom_call.1} parent=35 // pred_check
          %p689 = pneg %p465
        $region86: #{tpu_custom_call.1} parent=35 // pred_check_branch
          %691 = sbr.rel (%p689) target = $region88
        $region87: #{tpu_custom_call.1} parent=35 // pred_region
          %p692 = scmp.lt.s32.totalorder %s28, 1
          %s693 = scalar_select %p692, %s28, 1
          %s694 = smul.addr %s693, 8
          %s695 = smul.addr %s694, 8
          %s696 = scalar_lea.vmem %s17, %s695
        $region88: #{tpu_custom_call.1} parent=35 // pred_fallthru
          _
        // Predicated region
        $region89: #{tpu_custom_call.1} parent=35 // pred_check
          %p697 = pneg %p491
        $region90: #{tpu_custom_call.1} parent=35 // pred_check_branch
          %699 = sbr.rel (%p697) target = $region92
        $region91: #{tpu_custom_call.1} parent=35 // pred_region
          %p700 = scmp.lt.s32.totalorder %s28, 1
          %s701 = scalar_select %p700, %s28, 1
          %s702 = scalar_lea.vmem %s18, %s701
        $region92: #{tpu_custom_call.1} parent=35 // pred_fallthru
          _
        // Predicated region
        $region93: #{tpu_custom_call.1} parent=35 // pred_check
          %p703 = pneg %p517
        $region94: #{tpu_custom_call.1} parent=35 // pred_check_branch
          %705 = sbr.rel (%p703) target = $region96
        $region95: #{tpu_custom_call.1} parent=35 // pred_region
          %p706 = scmp.lt.s32.totalorder %s28, 1
          %s707 = scalar_select %p706, %s28, 1
          %s708 = scalar_lea.vmem %s19, %s707
        $region96: #{tpu_custom_call.1} parent=35 // pred_fallthru
          _
        // Predicated region
        $region97: #{tpu_custom_call.1} parent=35 // pred_check
          %p709 = pneg %p543
        $region98: #{tpu_custom_call.1} parent=35 // pred_check_branch
          %711 = sbr.rel (%p709) target = $region100
        $region99: #{tpu_custom_call.1} parent=35 // pred_region
          %p712 = scmp.lt.s32.totalorder %s28, 1
          %s713 = scalar_select %p712, %s28, 1
          %s714 = scalar_lea.vmem %s20, %s713
        $region100: #{tpu_custom_call.1} parent=35 // pred_fallthru
          _
      $region36: #{tpu_custom_call.1} parent=5 // pred_fallthru
        _
      %p715 = scmp.le.s32.totalorder 1, %s28
      %p716 = scmp.lt.s32.totalorder %s28, 3
      %p717 = pnand %p715, %p716
      %p718 = pneg %p717
      // Predicated region
      $region101: #{tpu_custom_call.1} parent=5 // pred_check
        _
      $region102: #{tpu_custom_call.1} parent=5 // pred_check_branch
        %720 = sbr.rel (%p717) target = $region104
      $region103: #{tpu_custom_call.1} parent=5 // pred_region
        %s721 = ssub.s32 %s28, 1
        %p722 = pneg %p49
        %p723 = pneg %p46
        %p724 = pneg %p70
        %p725 = pneg %p67
        %p726 = pneg %p91
        %p727 = pneg %p88
        %p728 = pneg %p112
        %p729 = pneg %p109
        %p730 = pneg %p133
        %p731 = pneg %p130
        %p732 = scmp.lt.s32.totalorder %s33, 1
        %s733 = scalar_select %p732, %s33, 1
        %s734 = smul.addr %s733, 8
        %s735 = smul.addr %s734, 8
        %s736 = scalar_lea.vmem %s5, %s735
        %p737 = pneg %p159
        %p738 = pneg %p156
        %p739 = scmp.lt.s32.totalorder %s33, 1
        %s740 = scalar_select %p739, %s33, 1
        %s741 = smul.addr %s740, 2
        %s742 = scalar_lea.vmem %s6, %s741
        %p743 = pneg %p185
        %p744 = pneg %p182
        %p745 = scmp.lt.s32.totalorder %s33, 1
        %s746 = scalar_select %p745, %s33, 1
        %s747 = smul.addr %s746, 8
        %s748 = smul.addr %s747, 8
        %s749 = scalar_lea.vmem %s7, %s748
        %p750 = pneg %p211
        %p751 = pneg %p208
        %p752 = scmp.lt.s32.totalorder %s33, 1
        %s753 = scalar_select %p752, %s33, 1
        %s754 = smul.addr %s753, 2
        %s755 = scalar_lea.vmem %s8, %s754
        %p756 = pneg %p237
        %p757 = pneg %p234
        %p758 = scmp.lt.s32.totalorder %s33, 1
        %s759 = scalar_select %p758, %s33, 1
        %s760 = smul.addr %s759, 8
        %s761 = smul.addr %s760, 8
        %s762 = scalar_lea.vmem %s9, %s761
        %p763 = pneg %p263
        %p764 = pneg %p260
        %p765 = scmp.lt.s32.totalorder %s33, 1
        %s766 = scalar_select %p765, %s33, 1
        %s767 = smul.addr %s766, 2
        %s768 = scalar_lea.vmem %s10, %s767
        %p769 = pneg %p289
        %p770 = pneg %p286
        %p771 = scmp.lt.s32.totalorder %s33, 1
        %s772 = scalar_select %p771, %s33, 1
        %s773 = smul.addr %s772, 4
        %s774 = smul.addr %s773, 8
        %s775 = scalar_lea.vmem %s11, %s774
        %p776 = pneg %p315
        %p777 = pneg %p312
        %p778 = scmp.lt.s32.totalorder %s33, 1
        %s779 = scalar_select %p778, %s33, 1
        %s780 = scalar_lea.vmem %s12, %s779
        %p781 = pneg %p341
        %p782 = pneg %p338
        %p783 = scmp.lt.s32.totalorder %s33, 1
        %s784 = scalar_select %p783, %s33, 1
        %s785 = scalar_lea.vmem %s13, %s784
        %p786 = pneg %p367
        %p787 = pneg %p364
        %p788 = scmp.lt.s32.totalorder %s33, 1
        %s789 = scalar_select %p788, %s33, 1
        %s790 = scalar_lea.vmem %s14, %s789
        %p791 = pneg %p393
        %p792 = pneg %p390
        %p793 = scmp.lt.s32.totalorder %s33, 1
        %s794 = scalar_select %p793, %s33, 1
        %s795 = smul.addr %s794, 4
        %s796 = smul.addr %s795, 8
        %s797 = scalar_lea.vmem %s15, %s796
        %p798 = pneg %p419
        %p799 = pneg %p416
        %p800 = scmp.lt.s32.totalorder %s33, 1
        %s801 = scalar_select %p800, %s33, 1
        %s802 = scalar_lea.vmem %s16, %s801
        %p803 = pneg %p445
        %p804 = pneg %p442
        %p805 = scmp.lt.s32.totalorder %s33, 1
        %s806 = scalar_select %p805, %s33, 1
        %s807 = smul.addr %s806, 8
        %s808 = smul.addr %s807, 8
        %s809 = scalar_lea.vmem %s17, %s808
        %p810 = pneg %p471
        %p811 = pneg %p468
        %p812 = scmp.lt.s32.totalorder %s33, 1
        %s813 = scalar_select %p812, %s33, 1
        %s814 = scalar_lea.vmem %s18, %s813
        %p815 = pneg %p497
        %p816 = pneg %p494
        %p817 = scmp.lt.s32.totalorder %s33, 1
        %s818 = scalar_select %p817, %s33, 1
        %s819 = scalar_lea.vmem %s19, %s818
        %p820 = pneg %p523
        %p821 = pneg %p520
        %p822 = scmp.lt.s32.totalorder %s33, 1
        %s823 = scalar_select %p822, %s33, 1
        %s824 = scalar_lea.vmem %s20, %s823
        %p825 = pneg %p549
        %p826 = pneg %p546
        %p827 = pneg %p570
        %p828 = pneg %p567
        %p829 = scmp.lt.s32.totalorder %s33, 1
        %s830 = scalar_select %p829, %s33, 1
        %s831 = smul.addr %s830, 8
        %s832 = smul.addr %s831, 8
        %s833 = scalar_lea.vmem %s5, %s832
        %p834 = scmp.lt.s32.totalorder %s33, 1
        %s835 = scalar_select %p834, %s33, 1
        %s836 = smul.addr %s835, 2
        %s837 = scalar_lea.vmem %s6, %s836
        %p838 = scmp.lt.s32.totalorder %s33, 1
        %s839 = scalar_select %p838, %s33, 1
        %s840 = smul.addr %s839, 8
        %s841 = smul.addr %s840, 8
        %s842 = scalar_lea.vmem %s7, %s841
        %p843 = scmp.lt.s32.totalorder %s33, 1
        %s844 = scalar_select %p843, %s33, 1
        %s845 = smul.addr %s844, 2
        %s846 = scalar_lea.vmem %s8, %s845
        %p847 = scmp.lt.s32.totalorder %s33, 1
        %s848 = scalar_select %p847, %s33, 1
        %s849 = smul.addr %s848, 8
        %s850 = smul.addr %s849, 8
        %s851 = scalar_lea.vmem %s9, %s850
        %p852 = scmp.lt.s32.totalorder %s33, 1
        %s853 = scalar_select %p852, %s33, 1
        %s854 = smul.addr %s853, 2
        %s855 = scalar_lea.vmem %s10, %s854
        %p856 = scmp.lt.s32.totalorder %s33, 1
        %s857 = scalar_select %p856, %s33, 1
        %s858 = smul.addr %s857, 4
        %s859 = smul.addr %s858, 8
        %s860 = scalar_lea.vmem %s11, %s859
        %p861 = scmp.lt.s32.totalorder %s33, 1
        %s862 = scalar_select %p861, %s33, 1
        %s863 = scalar_lea.vmem %s12, %s862
        %p864 = scmp.lt.s32.totalorder %s33, 1
        %s865 = scalar_select %p864, %s33, 1
        %s866 = scalar_lea.vmem %s13, %s865
        %p867 = scmp.lt.s32.totalorder %s33, 1
        %s868 = scalar_select %p867, %s33, 1
        %s869 = scalar_lea.vmem %s14, %s868
        %p870 = scmp.lt.s32.totalorder %s33, 1
        %s871 = scalar_select %p870, %s33, 1
        %s872 = smul.addr %s871, 4
        %s873 = smul.addr %s872, 8
        %s874 = scalar_lea.vmem %s15, %s873
        %p875 = scmp.lt.s32.totalorder %s33, 1
        %s876 = scalar_select %p875, %s33, 1
        %s877 = scalar_lea.vmem %s16, %s876
        %p878 = scmp.lt.s32.totalorder %s33, 1
        %s879 = scalar_select %p878, %s33, 1
        %s880 = smul.addr %s879, 8
        %s881 = smul.addr %s880, 8
        %s882 = scalar_lea.vmem %s17, %s881
        %p883 = scmp.lt.s32.totalorder %s33, 1
        %s884 = scalar_select %p883, %s33, 1
        %s885 = scalar_lea.vmem %s18, %s884
        %p886 = scmp.lt.s32.totalorder %s33, 1
        %s887 = scalar_select %p886, %s33, 1
        %s888 = scalar_lea.vmem %s19, %s887
        %p889 = scmp.lt.s32.totalorder %s33, 1
        %s890 = scalar_select %p889, %s33, 1
        %s891 = scalar_lea.vmem %s20, %s890
        %p892 = scmp.eq.s32.totalorder %s33, 0
        // Predicated region
        $region105: #{tpu_custom_call.1} parent=103 // pred_check
          %p893 = pneg %p892
        $region106: #{tpu_custom_call.1} parent=103 // pred_check_branch
          %895 = sbr.rel (%p893) target = $region108
        $region107: #{tpu_custom_call.1} parent=103 // pred_region
          %v896 = vld [vmem:[%s0] sm:$0xff]
          %v897 = vld [vmem:[%s0 + $0x8] sm:$0xff]
          %v898 = vld [vmem:[%s0 + $0x10] sm:$0xff]
          %v899 = vld [vmem:[%s0 + $0x18] sm:$0xff]
          %v900 = vld [vmem:[%s3] sm:$0x1]
          %v901 = vld [vmem:[%s4] sm:$0x1]
          %vm902 = vcmask 261120
          %v903 = vsel %vm902, %v896, 0.0
          %904 = vadd.xlane.f32.xlu0 %v903
          %v905 = vpop.xlane.xlu0 %904
          %v906 = vsel %vm902, %v897, 0.0
          %907 = vadd.xlane.f32.xlu0 %v906
          %v908 = vpop.xlane.xlu0 %907
          %v909 = vsel %vm902, %v898, 0.0
          %910 = vadd.xlane.f32.xlu0 %v909
          %v911 = vpop.xlane.xlu0 %910
          %v912 = vsel %vm902, %v899, 0.0
          %913 = vadd.xlane.f32.xlu0 %v912
          %v914 = vpop.xlane.xlu0 %913
          %v915 = vrcp.pop 32.0
          %v916 = vmul.f32 32.0, %v915
          %v917 = vsub.f32 1.0, %v916
          %v918 = vmul.f32 %v915, %v917
          %v919 = vadd.f32 %v915, %v918
          %vm920 = vweird.f32 %v915
          %v921 = vsel %vm920, %v915, %v919
          %v922 = vmul.f32 %v905, %v921
          %v923 = vmul.f32 %v908, %v921
          %v924 = vmul.f32 %v911, %v921
          %v925 = vmul.f32 %v914, %v921
          %v926 = vsub.f32 %v896, %v922
          %v927 = vsub.f32 %v897, %v923
          %v928 = vsub.f32 %v898, %v924
          %v929 = vsub.f32 %v899, %v925
          %v930 = vmul.f32 %v926, %v926
          %v931 = vmul.f32 %v927, %v927
          %v932 = vmul.f32 %v928, %v928
          %v933 = vmul.f32 %v929, %v929
          %v934 = vsel %vm902, %v930, 0.0
          %935 = vadd.xlane.f32.xlu0 %v934
          %v936 = vpop.xlane.xlu0 %935
          %v937 = vsel %vm902, %v931, 0.0
          %938 = vadd.xlane.f32.xlu0 %v937
          %v939 = vpop.xlane.xlu0 %938
          %v940 = vsel %vm902, %v932, 0.0
          %941 = vadd.xlane.f32.xlu0 %v940
          %v942 = vpop.xlane.xlu0 %941
          %v943 = vsel %vm902, %v933, 0.0
          %944 = vadd.xlane.f32.xlu0 %v943
          %v945 = vpop.xlane.xlu0 %944
          %v946 = vmul.f32 %v936, %v921
          %v947 = vmul.f32 %v939, %v921
          %v948 = vmul.f32 %v942, %v921
          %v949 = vmul.f32 %v945, %v921
          %v950 = vadd.f32 %v946, 1e-12
          %v951 = vadd.f32 %v947, 1e-12
          %v952 = vadd.f32 %v948, 1e-12
          %v953 = vadd.f32 %v949, 1e-12
          %v954 = vrsqrt.pop %v950
          %v955 = vmul.f32 %v954, %v950
          %v956 = vmul.f32 %v955, %v954
          %v957 = vmul.f32 0.5, %v956
          %v958 = vsub.f32 1.5, %v957
          %v959 = vmul.f32 %v954, %v958
          %vm960 = vweird.f32 %v950
          %vm961 = vweird.f32 %v954
          %vm962 = vmor %vm960, %vm961
          %v963 = vsel %vm962, %v954, %v959
          %v964 = vrsqrt.pop %v951
          %v965 = vmul.f32 %v964, %v951
          %v966 = vmul.f32 %v965, %v964
          %v967 = vmul.f32 0.5, %v966
          %v968 = vsub.f32 1.5, %v967
          %v969 = vmul.f32 %v964, %v968
          %vm970 = vweird.f32 %v951
          %vm971 = vweird.f32 %v964
          %vm972 = vmor %vm970, %vm971
          %v973 = vsel %vm972, %v964, %v969
          %v974 = vrsqrt.pop %v952
          %v975 = vmul.f32 %v974, %v952
          %v976 = vmul.f32 %v975, %v974
          %v977 = vmul.f32 0.5, %v976
          %v978 = vsub.f32 1.5, %v977
          %v979 = vmul.f32 %v974, %v978
          %vm980 = vweird.f32 %v952
          %vm981 = vweird.f32 %v974
          %vm982 = vmor %vm980, %vm981
          %v983 = vsel %vm982, %v974, %v979
          %v984 = vrsqrt.pop %v953
          %v985 = vmul.f32 %v984, %v953
          %v986 = vmul.f32 %v985, %v984
          %v987 = vmul.f32 0.5, %v986
          %v988 = vsub.f32 1.5, %v987
          %v989 = vmul.f32 %v984, %v988
          %vm990 = vweird.f32 %v953
          %vm991 = vweird.f32 %v984
          %vm992 = vmor %vm990, %vm991
          %v993 = vsel %vm992, %v984, %v989
          %v994 = vmul.f32 %v926, %v963
          %v995 = vmul.f32 %v927, %v973
          %v996 = vmul.f32 %v928, %v983
          %v997 = vmul.f32 %v929, %v993
          %v999 = vperm.slane %v900, 0
          %v1001 = vmul.f32 %v994, %v999
          %v1002 = vmul.f32 %v995, %v999
          %v1003 = vmul.f32 %v996, %v999
          %v1004 = vmul.f32 %v997, %v999
          %v1006 = vperm.slane %v901, 0
          %v1008 = vadd.f32 %v1001, %v1006
          %v1009 = vadd.f32 %v1002, %v1006
          %v1010 = vadd.f32 %v1003, %v1006
          %v1011 = vadd.f32 %v1004, %v1006
          %1012 = vst.msk [vmem:[#allocation2] sm:$0xff] %vm902, %v1008
          %1013 = vst.msk [vmem:[#allocation2 + $0x8] sm:$0xff] %vm902, %v1009
          %1014 = vst.msk [vmem:[#allocation2 + $0x10] sm:$0xff] %vm902, %v1010
          %1015 = vst.msk [vmem:[#allocation2 + $0x18] sm:$0xff] %vm902, %v1011
        $region108: #{tpu_custom_call.1} parent=103 // pred_fallthru
          _
        %v1016 = vld [vmem:[#allocation2] sm:$0xff]
        %v1017 = vld [vmem:[#allocation2 + $0x8] sm:$0xff]
        %v1018 = vld [vmem:[#allocation2 + $0x10] sm:$0xff]
        %v1019 = vld [vmem:[#allocation2 + $0x18] sm:$0xff]
        %v1020 = vld [vmem:[%s833] sm:$0xff]
        %v1021 = vld [vmem:[%s833 + $0x8] sm:$0xff]
        %v1022 = vld [vmem:[%s833 + $0x10] sm:$0xff]
        %v1023 = vld [vmem:[%s833 + $0x18] sm:$0xff]
        %v1024 = vld [vmem:[%s837] sm:$0x1]
        %v1026 = vperm.slane %v1024, 0
        %vm1028 = vcmask 261120
        %v1030 = vsel %vm1028, %v1016, 0
        %v1033 = vsel %vm1028, %v1017, 0
        %v1036 = vsel %vm1028, %v1018, 0
        %v1039 = vsel %vm1028, %v1019, 0
        %1041 = vmatpush.msra.mxu0 0.0
        %1042 = vmatpush.msra.mxu0 0.0
        %1043 = vmatpush.msra.mxu0 0.0
        %1044 = vmatpush.msra.mxu0 0.0
        %1045 = vmatpush.msra.mxu0 0.0
        %1046 = vmatpush.msra.mxu0 0.0
        %1047 = vmatpush.msra.mxu0 0.0
        %1048 = vmatpush.msra.mxu0 0.0
        %1049 = vmatpush.msra.mxu0 0.0
        %1050 = vmatpush.msra.mxu0 0.0
        %1051 = vmatpush.msra.mxu0 0.0
        %1052 = vmatpush.msra.mxu0 0.0
        %1053 = vmatpush.msra.mxu0 %v1023
        %1054 = vmatpush.msra.mxu0 %v1022
        %1055 = vmatpush.msra.mxu0 %v1021
        %1056 = vmatpush.msra.mxu0 %v1020
        %1057 = vmatmul.f32.gmra.mxu0 %v1030
        %v1058 = vpop.f32.mrf.mxu0
        %v1059 = vadd.f32 %v1026, %v1058
        %1060 = vmatmul.f32.gmra.mxu0 %v1033
        %v1061 = vpop.f32.mrf.mxu0
        %v1062 = vadd.f32 %v1026, %v1061
        %1063 = vmatmul.f32.gmra.mxu0 %v1036
        %v1064 = vpop.f32.mrf.mxu0
        %v1065 = vadd.f32 %v1026, %v1064
        %1066 = vmatmul.f32.gmra.mxu0 %v1039
        %v1067 = vpop.f32.mrf.mxu0
        %v1068 = vadd.f32 %v1026, %v1067
        %1069 = vdwg.mxu0
        %s1070 = scalar_lea.vmem %s833, 32
        %v1071 = vld [vmem:[%s1070] sm:$0xff]
        %v1072 = vld [vmem:[%s1070 + $0x8] sm:$0xff]
        %v1073 = vld [vmem:[%s1070 + $0x10] sm:$0xff]
        %v1074 = vld [vmem:[%s1070 + $0x18] sm:$0xff]
        %s1075 = scalar_lea.vmem %s837, 1
        %v1076 = vld [vmem:[%s1075] sm:$0x1]
        %v1078 = vperm.slane %v1076, 0
        %1080 = vmatpush.msra.mxu0 0.0
        %1081 = vmatpush.msra.mxu0 0.0
        %1082 = vmatpush.msra.mxu0 0.0
        %1083 = vmatpush.msra.mxu0 0.0
        %1084 = vmatpush.msra.mxu0 0.0
        %1085 = vmatpush.msra.mxu0 0.0
        %1086 = vmatpush.msra.mxu0 0.0
        %1087 = vmatpush.msra.mxu0 0.0
        %1088 = vmatpush.msra.mxu0 0.0
        %1089 = vmatpush.msra.mxu0 0.0
        %1090 = vmatpush.msra.mxu0 0.0
        %1091 = vmatpush.msra.mxu0 0.0
        %1092 = vmatpush.msra.mxu0 %v1074
        %1093 = vmatpush.msra.mxu0 %v1073
        %1094 = vmatpush.msra.mxu0 %v1072
        %1095 = vmatpush.msra.mxu0 %v1071
        %1096 = vmatmul.f32.gmra.mxu0 %v1030
        %v1097 = vpop.f32.mrf.mxu0
        %v1098 = vadd.f32 %v1078, %v1097
        %1099 = vmatmul.f32.gmra.mxu0 %v1033
        %v1100 = vpop.f32.mrf.mxu0
        %v1101 = vadd.f32 %v1078, %v1100
        %1102 = vmatmul.f32.gmra.mxu0 %v1036
        %v1103 = vpop.f32.mrf.mxu0
        %v1104 = vadd.f32 %v1078, %v1103
        %1105 = vmatmul.f32.gmra.mxu0 %v1039
        %v1106 = vpop.f32.mrf.mxu0
        %v1107 = vadd.f32 %v1078, %v1106
        %1108 = vdwg.mxu0
        %v1109 = vld [vmem:[%s842] sm:$0xff]
        %v1110 = vld [vmem:[%s842 + $0x8] sm:$0xff]
        %v1111 = vld [vmem:[%s842 + $0x10] sm:$0xff]
        %v1112 = vld [vmem:[%s842 + $0x18] sm:$0xff]
        %v1113 = vld [vmem:[%s846] sm:$0x1]
        %v1115 = vperm.slane %v1113, 0
        %1117 = vmatpush.msra.mxu0 0.0
        %1118 = vmatpush.msra.mxu0 0.0
        %1119 = vmatpush.msra.mxu0 0.0
        %1120 = vmatpush.msra.mxu0 0.0
        %1121 = vmatpush.msra.mxu0 0.0
        %1122 = vmatpush.msra.mxu0 0.0
        %1123 = vmatpush.msra.mxu0 0.0
        %1124 = vmatpush.msra.mxu0 0.0
        %1125 = vmatpush.msra.mxu0 0.0
        %1126 = vmatpush.msra.mxu0 0.0
        %1127 = vmatpush.msra.mxu0 0.0
        %1128 = vmatpush.msra.mxu0 0.0
        %1129 = vmatpush.msra.mxu0 %v1112
        %1130 = vmatpush.msra.mxu0 %v1111
        %1131 = vmatpush.msra.mxu0 %v1110
        %1132 = vmatpush.msra.mxu0 %v1109
        %1133 = vmatmul.f32.gmra.mxu0 %v1030
        %v1134 = vpop.f32.mrf.mxu0
        %v1135 = vadd.f32 %v1115, %v1134
        %1136 = vmatmul.f32.gmra.mxu0 %v1033
        %v1137 = vpop.f32.mrf.mxu0
        %v1138 = vadd.f32 %v1115, %v1137
        %1139 = vmatmul.f32.gmra.mxu0 %v1036
        %v1140 = vpop.f32.mrf.mxu0
        %v1141 = vadd.f32 %v1115, %v1140
        %1142 = vmatmul.f32.gmra.mxu0 %v1039
        %v1143 = vpop.f32.mrf.mxu0
        %v1144 = vadd.f32 %v1115, %v1143
        %1145 = vdwg.mxu0
        %s1146 = scalar_lea.vmem %s842, 32
        %v1147 = vld [vmem:[%s1146] sm:$0xff]
        %v1148 = vld [vmem:[%s1146 + $0x8] sm:$0xff]
        %v1149 = vld [vmem:[%s1146 + $0x10] sm:$0xff]
        %v1150 = vld [vmem:[%s1146 + $0x18] sm:$0xff]
        %s1151 = scalar_lea.vmem %s846, 1
        %v1152 = vld [vmem:[%s1151] sm:$0x1]
        %v1154 = vperm.slane %v1152, 0
        %1156 = vmatpush.msra.mxu0 0.0
        %1157 = vmatpush.msra.mxu0 0.0
        %1158 = vmatpush.msra.mxu0 0.0
        %1159 = vmatpush.msra.mxu0 0.0
        %1160 = vmatpush.msra.mxu0 0.0
        %1161 = vmatpush.msra.mxu0 0.0
        %1162 = vmatpush.msra.mxu0 0.0
        %1163 = vmatpush.msra.mxu0 0.0
        %1164 = vmatpush.msra.mxu0 0.0
        %1165 = vmatpush.msra.mxu0 0.0
        %1166 = vmatpush.msra.mxu0 0.0
        %1167 = vmatpush.msra.mxu0 0.0
        %1168 = vmatpush.msra.mxu0 %v1150
        %1169 = vmatpush.msra.mxu0 %v1149
        %1170 = vmatpush.msra.mxu0 %v1148
        %1171 = vmatpush.msra.mxu0 %v1147
        %1172 = vmatmul.f32.gmra.mxu0 %v1030
        %v1173 = vpop.f32.mrf.mxu0
        %v1174 = vadd.f32 %v1154, %v1173
        %1175 = vmatmul.f32.gmra.mxu0 %v1033
        %v1176 = vpop.f32.mrf.mxu0
        %v1177 = vadd.f32 %v1154, %v1176
        %1178 = vmatmul.f32.gmra.mxu0 %v1036
        %v1179 = vpop.f32.mrf.mxu0
        %v1180 = vadd.f32 %v1154, %v1179
        %1181 = vmatmul.f32.gmra.mxu0 %v1039
        %v1182 = vpop.f32.mrf.mxu0
        %v1183 = vadd.f32 %v1154, %v1182
        %1184 = vdwg.mxu0
        %v1185 = vld [vmem:[%s851] sm:$0xff]
        %v1186 = vld [vmem:[%s851 + $0x8] sm:$0xff]
        %v1187 = vld [vmem:[%s851 + $0x10] sm:$0xff]
        %v1188 = vld [vmem:[%s851 + $0x18] sm:$0xff]
        %v1189 = vld [vmem:[%s855] sm:$0x1]
        %v1191 = vperm.slane %v1189, 0
        %1193 = vmatpush.msra.mxu0 0.0
        %1194 = vmatpush.msra.mxu0 0.0
        %1195 = vmatpush.msra.mxu0 0.0
        %1196 = vmatpush.msra.mxu0 0.0
        %1197 = vmatpush.msra.mxu0 0.0
        %1198 = vmatpush.msra.mxu0 0.0
        %1199 = vmatpush.msra.mxu0 0.0
        %1200 = vmatpush.msra.mxu0 0.0
        %1201 = vmatpush.msra.mxu0 0.0
        %1202 = vmatpush.msra.mxu0 0.0
        %1203 = vmatpush.msra.mxu0 0.0
        %1204 = vmatpush.msra.mxu0 0.0
        %1205 = vmatpush.msra.mxu0 %v1188
        %1206 = vmatpush.msra.mxu0 %v1187
        %1207 = vmatpush.msra.mxu0 %v1186
        %1208 = vmatpush.msra.mxu0 %v1185
        %1209 = vmatmul.f32.gmra.mxu0 %v1030
        %v1210 = vpop.f32.mrf.mxu0
        %v1211 = vadd.f32 %v1191, %v1210
        %1212 = vmatmul.f32.gmra.mxu0 %v1033
        %v1213 = vpop.f32.mrf.mxu0
        %v1214 = vadd.f32 %v1191, %v1213
        %1215 = vmatmul.f32.gmra.mxu0 %v1036
        %v1216 = vpop.f32.mrf.mxu0
        %v1217 = vadd.f32 %v1191, %v1216
        %1218 = vmatmul.f32.gmra.mxu0 %v1039
        %v1219 = vpop.f32.mrf.mxu0
        %v1220 = vadd.f32 %v1191, %v1219
        %1221 = vdwg.mxu0
        %s1222 = scalar_lea.vmem %s851, 32
        %v1223 = vld [vmem:[%s1222] sm:$0xff]
        %v1224 = vld [vmem:[%s1222 + $0x8] sm:$0xff]
        %v1225 = vld [vmem:[%s1222 + $0x10] sm:$0xff]
        %v1226 = vld [vmem:[%s1222 + $0x18] sm:$0xff]
        %s1227 = scalar_lea.vmem %s855, 1
        %v1228 = vld [vmem:[%s1227] sm:$0x1]
        %v1230 = vperm.slane %v1228, 0
        %1232 = vmatpush.msra.mxu0 0.0
        %1233 = vmatpush.msra.mxu0 0.0
        %1234 = vmatpush.msra.mxu0 0.0
        %1235 = vmatpush.msra.mxu0 0.0
        %1236 = vmatpush.msra.mxu0 0.0
        %1237 = vmatpush.msra.mxu0 0.0
        %1238 = vmatpush.msra.mxu0 0.0
        %1239 = vmatpush.msra.mxu0 0.0
        %1240 = vmatpush.msra.mxu0 0.0
        %1241 = vmatpush.msra.mxu0 0.0
        %1242 = vmatpush.msra.mxu0 0.0
        %1243 = vmatpush.msra.mxu0 0.0
        %1244 = vmatpush.msra.mxu0 %v1226
        %1245 = vmatpush.msra.mxu0 %v1225
        %1246 = vmatpush.msra.mxu0 %v1224
        %1247 = vmatpush.msra.mxu0 %v1223
        %1248 = vmatmul.f32.gmra.mxu0 %v1030
        %v1249 = vpop.f32.mrf.mxu0
        %v1250 = vadd.f32 %v1230, %v1249
        %1251 = vmatmul.f32.gmra.mxu0 %v1033
        %v1252 = vpop.f32.mrf.mxu0
        %v1253 = vadd.f32 %v1230, %v1252
        %1254 = vmatmul.f32.gmra.mxu0 %v1036
        %v1255 = vpop.f32.mrf.mxu0
        %v1256 = vadd.f32 %v1230, %v1255
        %1257 = vmatmul.f32.gmra.mxu0 %v1039
        %v1258 = vpop.f32.mrf.mxu0
        %v1259 = vadd.f32 %v1230, %v1258
        %1260 = vdwg.mxu0
        %vm1261 = vcmask 130048
        %v1263 = vsel %vm1261, %v1059, 0
        %v1266 = vsel %vm1261, %v1062, 0
        %v1269 = vsel %vm1261, %v1135, 0
        %v1272 = vsel %vm1261, %v1138, 0
        %1274 = vmatpush.xpose.msra.mxu0 0.0
        %1275 = vmatpush.xpose.msra.mxu0 0.0
        %1276 = vmatpush.xpose.msra.mxu0 0.0
        %1277 = vmatpush.xpose.msra.mxu0 0.0
        %1278 = vmatpush.xpose.msra.mxu0 0.0
        %1279 = vmatpush.xpose.msra.mxu0 0.0
        %1280 = vmatpush.xpose.msra.mxu0 0.0
        %1281 = vmatpush.xpose.msra.mxu0 0.0
        %1282 = vmatpush.xpose.msra.mxu0 0.0
        %1283 = vmatpush.xpose.msra.mxu0 0.0
        %1284 = vmatpush.xpose.msra.mxu0 0.0
        %1285 = vmatpush.xpose.msra.mxu0 0.0
        %1286 = vmatpush.xpose.msra.mxu0 0.0
        %1287 = vmatpush.xpose.msra.mxu0 0.0
        %1288 = vmatpush.xpose.msra.mxu0 %v1272
        %1289 = vmatpush.xpose.msra.mxu0 %v1269
        %1290 = vmatmul.f32.gmra.mxu0 %v1263
        %v1291 = vpop.f32.mrf.mxu0
        %v1292 = vadd.f32 0.0, %v1291
        %1293 = vmatmul.f32.gmra.mxu0 %v1266
        %v1294 = vpop.f32.mrf.mxu0
        %v1295 = vadd.f32 0.0, %v1294
        %1296 = vdwg.mxu0
        %v1298 = vsel %vm1261, %v1065, 0
        %v1301 = vsel %vm1261, %v1068, 0
        %v1304 = vsel %vm1261, %v1141, 0
        %v1307 = vsel %vm1261, %v1144, 0
        %1309 = vmatpush.xpose.msra.mxu0 0.0
        %1310 = vmatpush.xpose.msra.mxu0 0.0
        %1311 = vmatpush.xpose.msra.mxu0 0.0
        %1312 = vmatpush.xpose.msra.mxu0 0.0
        %1313 = vmatpush.xpose.msra.mxu0 0.0
        %1314 = vmatpush.xpose.msra.mxu0 0.0
        %1315 = vmatpush.xpose.msra.mxu0 0.0
        %1316 = vmatpush.xpose.msra.mxu0 0.0
        %1317 = vmatpush.xpose.msra.mxu0 0.0
        %1318 = vmatpush.xpose.msra.mxu0 0.0
        %1319 = vmatpush.xpose.msra.mxu0 0.0
        %1320 = vmatpush.xpose.msra.mxu0 0.0
        %1321 = vmatpush.xpose.msra.mxu0 0.0
        %1322 = vmatpush.xpose.msra.mxu0 0.0
        %1323 = vmatpush.xpose.msra.mxu0 %v1307
        %1324 = vmatpush.xpose.msra.mxu0 %v1304
        %1325 = vmatmul.f32.gmra.mxu0 %v1298
        %v1326 = vpop.f32.mrf.mxu0
        %v1327 = vadd.f32 0.0, %v1326
        %1328 = vmatmul.f32.gmra.mxu0 %v1301
        %v1329 = vpop.f32.mrf.mxu0
        %v1330 = vadd.f32 0.0, %v1329
        %1331 = vdwg.mxu0
        %v1333 = vsel %vm1261, %v1098, 0
        %v1336 = vsel %vm1261, %v1101, 0
        %v1339 = vsel %vm1261, %v1174, 0
        %v1342 = vsel %vm1261, %v1177, 0
        %1344 = vmatpush.xpose.msra.mxu0 0.0
        %1345 = vmatpush.xpose.msra.mxu0 0.0
        %1346 = vmatpush.xpose.msra.mxu0 0.0
        %1347 = vmatpush.xpose.msra.mxu0 0.0
        %1348 = vmatpush.xpose.msra.mxu0 0.0
        %1349 = vmatpush.xpose.msra.mxu0 0.0
        %1350 = vmatpush.xpose.msra.mxu0 0.0
        %1351 = vmatpush.xpose.msra.mxu0 0.0
        %1352 = vmatpush.xpose.msra.mxu0 0.0
        %1353 = vmatpush.xpose.msra.mxu0 0.0
        %1354 = vmatpush.xpose.msra.mxu0 0.0
        %1355 = vmatpush.xpose.msra.mxu0 0.0
        %1356 = vmatpush.xpose.msra.mxu0 0.0
        %1357 = vmatpush.xpose.msra.mxu0 0.0
        %1358 = vmatpush.xpose.msra.mxu0 %v1342
        %1359 = vmatpush.xpose.msra.mxu0 %v1339
        %1360 = vmatmul.f32.gmra.mxu0 %v1333
        %v1361 = vpop.f32.mrf.mxu0
        %v1362 = vadd.f32 0.0, %v1361
        %1363 = vmatmul.f32.gmra.mxu0 %v1336
        %v1364 = vpop.f32.mrf.mxu0
        %v1365 = vadd.f32 0.0, %v1364
        %1366 = vdwg.mxu0
        %v1368 = vsel %vm1261, %v1104, 0
        %v1371 = vsel %vm1261, %v1107, 0
        %v1374 = vsel %vm1261, %v1180, 0
        %v1377 = vsel %vm1261, %v1183, 0
        %1379 = vmatpush.xpose.msra.mxu0 0.0
        %1380 = vmatpush.xpose.msra.mxu0 0.0
        %1381 = vmatpush.xpose.msra.mxu0 0.0
        %1382 = vmatpush.xpose.msra.mxu0 0.0
        %1383 = vmatpush.xpose.msra.mxu0 0.0
        %1384 = vmatpush.xpose.msra.mxu0 0.0
        %1385 = vmatpush.xpose.msra.mxu0 0.0
        %1386 = vmatpush.xpose.msra.mxu0 0.0
        %1387 = vmatpush.xpose.msra.mxu0 0.0
        %1388 = vmatpush.xpose.msra.mxu0 0.0
        %1389 = vmatpush.xpose.msra.mxu0 0.0
        %1390 = vmatpush.xpose.msra.mxu0 0.0
        %1391 = vmatpush.xpose.msra.mxu0 0.0
        %1392 = vmatpush.xpose.msra.mxu0 0.0
        %1393 = vmatpush.xpose.msra.mxu0 %v1377
        %1394 = vmatpush.xpose.msra.mxu0 %v1374
        %1395 = vmatmul.f32.gmra.mxu0 %v1368
        %v1396 = vpop.f32.mrf.mxu0
        %v1397 = vadd.f32 0.0, %v1396
        %1398 = vmatmul.f32.gmra.mxu0 %v1371
        %v1399 = vpop.f32.mrf.mxu0
        %v1400 = vadd.f32 0.0, %v1399
        %1401 = vdwg.mxu0
        %v1402 = vmul.f32 %v1292, 0.25
        %v1403 = vmul.f32 %v1295, 0.25
        %v1404 = vmul.f32 %v1327, 0.25
        %v1405 = vmul.f32 %v1330, 0.25
        %v1406 = vmul.f32 %v1362, 0.25
        %v1407 = vmul.f32 %v1365, 0.25
        %v1408 = vmul.f32 %v1397, 0.25
        %v1409 = vmul.f32 %v1400, 0.25
        %v1410 = vld [vmem:[%s1] sm:$0x1]
        %v1411 = vld [vmem:[%s1 + $0x1] sm:$0x1]
        %v1412 = vld [vmem:[%s1 + $0x2] sm:$0x1]
        %v1413 = vld [vmem:[%s1 + $0x3] sm:$0x1]
        %v1418 = vperm.slane %v1410, 0
        %v1419 = vperm.slane %v1411, 0
        %v1420 = vperm.slane %v1412, 0
        %v1421 = vperm.slane %v1413, 0
        %v1426 = vadd.f32 %v1402, %v1418
        %v1427 = vadd.f32 %v1403, %v1418
        %v1428 = vadd.f32 %v1404, %v1419
        %v1429 = vadd.f32 %v1405, %v1419
        %v1430 = vadd.f32 %v1406, %v1420
        %v1431 = vadd.f32 %v1407, %v1420
        %v1432 = vadd.f32 %v1408, %v1421
        %v1433 = vadd.f32 %v1409, %v1421
        %v1434 = vsel %vm1261, %v1426, -inf
        %1435 = vmax.xlane.f32.xlu0 %v1434
        %v1436 = vpop.xlane.xlu0 %1435
        %v1437 = vsel %vm1261, %v1427, -inf
        %1438 = vmax.xlane.f32.xlu0 %v1437
        %v1439 = vpop.xlane.xlu0 %1438
        %v1440 = vsel %vm1261, %v1428, -inf
        %1441 = vmax.xlane.f32.xlu0 %v1440
        %v1442 = vpop.xlane.xlu0 %1441
        %v1443 = vsel %vm1261, %v1429, -inf
        %1444 = vmax.xlane.f32.xlu0 %v1443
        %v1445 = vpop.xlane.xlu0 %1444
        %v1446 = vsel %vm1261, %v1430, -inf
        %1447 = vmax.xlane.f32.xlu0 %v1446
        %v1448 = vpop.xlane.xlu0 %1447
        %v1449 = vsel %vm1261, %v1431, -inf
        %1450 = vmax.xlane.f32.xlu0 %v1449
        %v1451 = vpop.xlane.xlu0 %1450
        %v1452 = vsel %vm1261, %v1432, -inf
        %1453 = vmax.xlane.f32.xlu0 %v1452
        %v1454 = vpop.xlane.xlu0 %1453
        %v1455 = vsel %vm1261, %v1433, -inf
        %1456 = vmax.xlane.f32.xlu0 %v1455
        %v1457 = vpop.xlane.xlu0 %1456
        %v1458 = vsub.f32 %v1426, %v1436
        %v1459 = vsub.f32 %v1427, %v1439
        %v1460 = vsub.f32 %v1428, %v1442
        %v1461 = vsub.f32 %v1429, %v1445
        %v1462 = vsub.f32 %v1430, %v1448
        %v1463 = vsub.f32 %v1431, %v1451
        %v1464 = vsub.f32 %v1432, %v1454
        %v1465 = vsub.f32 %v1433, %v1457
        %v1466 = vmul.f32 %v1458, 1.442695
        %v1467 = vpow.pop %v1466
        %v1468 = vmul.f32 %v1459, 1.442695
        %v1469 = vpow.pop %v1468
        %v1470 = vmul.f32 %v1460, 1.442695
        %v1471 = vpow.pop %v1470
        %v1472 = vmul.f32 %v1461, 1.442695
        %v1473 = vpow.pop %v1472
        %v1474 = vmul.f32 %v1462, 1.442695
        %v1475 = vpow.pop %v1474
        %v1476 = vmul.f32 %v1463, 1.442695
        %v1477 = vpow.pop %v1476
        %v1478 = vmul.f32 %v1464, 1.442695
        %v1479 = vpow.pop %v1478
        %v1480 = vmul.f32 %v1465, 1.442695
        %v1481 = vpow.pop %v1480
        %v1482 = vsel %vm1261, %v1467, 0.0
        %1483 = vadd.xlane.f32.xlu0 %v1482
        %v1484 = vpop.xlane.xlu0 %1483
        %v1485 = vsel %vm1261, %v1469, 0.0
        %1486 = vadd.xlane.f32.xlu0 %v1485
        %v1487 = vpop.xlane.xlu0 %1486
        %v1488 = vsel %vm1261, %v1471, 0.0
        %1489 = vadd.xlane.f32.xlu0 %v1488
        %v1490 = vpop.xlane.xlu0 %1489
        %v1491 = vsel %vm1261, %v1473, 0.0
        %1492 = vadd.xlane.f32.xlu0 %v1491
        %v1493 = vpop.xlane.xlu0 %1492
        %v1494 = vsel %vm1261, %v1475, 0.0
        %1495 = vadd.xlane.f32.xlu0 %v1494
        %v1496 = vpop.xlane.xlu0 %1495
        %v1497 = vsel %vm1261, %v1477, 0.0
        %1498 = vadd.xlane.f32.xlu0 %v1497
        %v1499 = vpop.xlane.xlu0 %1498
        %v1500 = vsel %vm1261, %v1479, 0.0
        %1501 = vadd.xlane.f32.xlu0 %v1500
        %v1502 = vpop.xlane.xlu0 %1501
        %v1503 = vsel %vm1261, %v1481, 0.0
        %1504 = vadd.xlane.f32.xlu0 %v1503
        %v1505 = vpop.xlane.xlu0 %1504
        %v1506 = vrcp.pop %v1484
        %v1507 = vrcp.pop %v1487
        %v1508 = vrcp.pop %v1490
        %v1509 = vrcp.pop %v1493
        %v1510 = vrcp.pop %v1496
        %v1511 = vrcp.pop %v1499
        %v1512 = vrcp.pop %v1502
        %v1513 = vrcp.pop %v1505
        %v1514 = vmul.f32 %v1467, %v1506
        %v1515 = vmul.f32 %v1469, %v1507
        %v1516 = vmul.f32 %v1471, %v1508
        %v1517 = vmul.f32 %v1473, %v1509
        %v1518 = vmul.f32 %v1475, %v1510
        %v1519 = vmul.f32 %v1477, %v1511
        %v1520 = vmul.f32 %v1479, %v1512
        %v1521 = vmul.f32 %v1481, %v1513
        %v1523 = vsel %vm1261, %v1514, 0
        %v1526 = vsel %vm1261, %v1515, 0
        %1528 = vmatpush.msra.mxu0 0.0
        %1529 = vmatpush.msra.mxu0 0.0
        %1530 = vmatpush.msra.mxu0 0.0
        %1531 = vmatpush.msra.mxu0 0.0
        %1532 = vmatpush.msra.mxu0 0.0
        %1533 = vmatpush.msra.mxu0 0.0
        %1534 = vmatpush.msra.mxu0 0.0
        %1535 = vmatpush.msra.mxu0 0.0
        %1536 = vmatpush.msra.mxu0 0.0
        %1537 = vmatpush.msra.mxu0 0.0
        %1538 = vmatpush.msra.mxu0 0.0
        %1539 = vmatpush.msra.mxu0 0.0
        %1540 = vmatpush.msra.mxu0 0.0
        %1541 = vmatpush.msra.mxu0 0.0
        %1542 = vmatpush.msra.mxu0 %v1214
        %1543 = vmatpush.msra.mxu0 %v1211
        %1544 = vmatmul.f32.gmra.mxu0 %v1523
        %v1545 = vpop.f32.mrf.mxu0
        %v1546 = vadd.f32 0.0, %v1545
        %1547 = vmatmul.f32.gmra.mxu0 %v1526
        %v1548 = vpop.f32.mrf.mxu0
        %v1549 = vadd.f32 0.0, %v1548
        %1550 = vdwg.mxu0
        %v1552 = vsel %vm1261, %v1516, 0
        %v1555 = vsel %vm1261, %v1517, 0
        %1557 = vmatpush.msra.mxu0 0.0
        %1558 = vmatpush.msra.mxu0 0.0
        %1559 = vmatpush.msra.mxu0 0.0
        %1560 = vmatpush.msra.mxu0 0.0
        %1561 = vmatpush.msra.mxu0 0.0
        %1562 = vmatpush.msra.mxu0 0.0
        %1563 = vmatpush.msra.mxu0 0.0
        %1564 = vmatpush.msra.mxu0 0.0
        %1565 = vmatpush.msra.mxu0 0.0
        %1566 = vmatpush.msra.mxu0 0.0
        %1567 = vmatpush.msra.mxu0 0.0
        %1568 = vmatpush.msra.mxu0 0.0
        %1569 = vmatpush.msra.mxu0 0.0
        %1570 = vmatpush.msra.mxu0 0.0
        %1571 = vmatpush.msra.mxu0 %v1220
        %1572 = vmatpush.msra.mxu0 %v1217
        %1573 = vmatmul.f32.gmra.mxu0 %v1552
        %v1574 = vpop.f32.mrf.mxu0
        %v1575 = vadd.f32 0.0, %v1574
        %1576 = vmatmul.f32.gmra.mxu0 %v1555
        %v1577 = vpop.f32.mrf.mxu0
        %v1578 = vadd.f32 0.0, %v1577
        %1579 = vdwg.mxu0
        %v1581 = vsel %vm1261, %v1518, 0
        %v1584 = vsel %vm1261, %v1519, 0
        %1586 = vmatpush.msra.mxu0 0.0
        %1587 = vmatpush.msra.mxu0 0.0
        %1588 = vmatpush.msra.mxu0 0.0
        %1589 = vmatpush.msra.mxu0 0.0
        %1590 = vmatpush.msra.mxu0 0.0
        %1591 = vmatpush.msra.mxu0 0.0
        %1592 = vmatpush.msra.mxu0 0.0
        %1593 = vmatpush.msra.mxu0 0.0
        %1594 = vmatpush.msra.mxu0 0.0
        %1595 = vmatpush.msra.mxu0 0.0
        %1596 = vmatpush.msra.mxu0 0.0
        %1597 = vmatpush.msra.mxu0 0.0
        %1598 = vmatpush.msra.mxu0 0.0
        %1599 = vmatpush.msra.mxu0 0.0
        %1600 = vmatpush.msra.mxu0 %v1253
        %1601 = vmatpush.msra.mxu0 %v1250
        %1602 = vmatmul.f32.gmra.mxu0 %v1581
        %v1603 = vpop.f32.mrf.mxu0
        %v1604 = vadd.f32 0.0, %v1603
        %1605 = vmatmul.f32.gmra.mxu0 %v1584
        %v1606 = vpop.f32.mrf.mxu0
        %v1607 = vadd.f32 0.0, %v1606
        %1608 = vdwg.mxu0
        %v1610 = vsel %vm1261, %v1520, 0
        %v1613 = vsel %vm1261, %v1521, 0
        %1615 = vmatpush.msra.mxu0 0.0
        %1616 = vmatpush.msra.mxu0 0.0
        %1617 = vmatpush.msra.mxu0 0.0
        %1618 = vmatpush.msra.mxu0 0.0
        %1619 = vmatpush.msra.mxu0 0.0
        %1620 = vmatpush.msra.mxu0 0.0
        %1621 = vmatpush.msra.mxu0 0.0
        %1622 = vmatpush.msra.mxu0 0.0
        %1623 = vmatpush.msra.mxu0 0.0
        %1624 = vmatpush.msra.mxu0 0.0
        %1625 = vmatpush.msra.mxu0 0.0
        %1626 = vmatpush.msra.mxu0 0.0
        %1627 = vmatpush.msra.mxu0 0.0
        %1628 = vmatpush.msra.mxu0 0.0
        %1629 = vmatpush.msra.mxu0 %v1259
        %1630 = vmatpush.msra.mxu0 %v1256
        %1631 = vmatmul.f32.gmra.mxu0 %v1610
        %v1632 = vpop.f32.mrf.mxu0
        %v1633 = vadd.f32 0.0, %v1632
        %1634 = vmatmul.f32.gmra.mxu0 %v1613
        %v1635 = vpop.f32.mrf.mxu0
        %v1636 = vadd.f32 0.0, %v1635
        %1637 = vdwg.mxu0
        %v1638 = vld [vmem:[%s863] sm:$0x1]
        %v1639 = vld [vmem:[%s860] sm:$0xff]
        %v1640 = vld [vmem:[%s860 + $0x8] sm:$0xff]
        %v1642 = vsel %vm1261, %v1546, 0
        %v1645 = vsel %vm1261, %v1549, 0
        %v1648 = vsel %vm1261, %v1575, 0
        %v1651 = vsel %vm1261, %v1578, 0
        %1653 = vmatpush.msra.mxu0 0.0
        %1654 = vmatpush.msra.mxu0 0.0
        %1655 = vmatpush.msra.mxu0 0.0
        %1656 = vmatpush.msra.mxu0 0.0
        %1657 = vmatpush.msra.mxu0 0.0
        %1658 = vmatpush.msra.mxu0 0.0
        %1659 = vmatpush.msra.mxu0 0.0
        %1660 = vmatpush.msra.mxu0 0.0
        %1661 = vmatpush.msra.mxu0 0.0
        %1662 = vmatpush.msra.mxu0 0.0
        %1663 = vmatpush.msra.mxu0 0.0
        %1664 = vmatpush.msra.mxu0 0.0
        %1665 = vmatpush.msra.mxu0 0.0
        %1666 = vmatpush.msra.mxu0 0.0
        %1667 = vmatpush.msra.mxu0 %v1640
        %1668 = vmatpush.msra.mxu0 %v1639
        %1669 = vmatmul.f32.gmra.mxu0 %v1642
        %v1670 = vpop.f32.mrf.mxu0
        %v1671 = vadd.f32 0.0, %v1670
        %1672 = vmatmul.f32.gmra.mxu0 %v1645
        %v1673 = vpop.f32.mrf.mxu0
        %v1674 = vadd.f32 0.0, %v1673
        %1675 = vmatmul.f32.gmra.mxu0 %v1648
        %v1676 = vpop.f32.mrf.mxu0
        %v1677 = vadd.f32 0.0, %v1676
        %1678 = vmatmul.f32.gmra.mxu0 %v1651
        %v1679 = vpop.f32.mrf.mxu0
        %v1680 = vadd.f32 0.0, %v1679
        %1681 = vdwg.mxu0
        %v1683 = vperm.slane %v1638, 0
        %v1685 = vadd.f32 %v1683, %v1671
        %v1686 = vadd.f32 %v1683, %v1674
        %v1687 = vadd.f32 %v1683, %v1677
        %v1688 = vadd.f32 %v1683, %v1680
        %s1689 = scalar_lea.vmem %s860, 16
        %v1690 = vld [vmem:[%s1689] sm:$0xff]
        %v1691 = vld [vmem:[%s1689 + $0x8] sm:$0xff]
        %v1693 = vsel %vm1261, %v1604, 0
        %v1696 = vsel %vm1261, %v1607, 0
        %v1699 = vsel %vm1261, %v1633, 0
        %v1702 = vsel %vm1261, %v1636, 0
        %1704 = vmatpush.msra.mxu0 0.0
        %1705 = vmatpush.msra.mxu0 0.0
        %1706 = vmatpush.msra.mxu0 0.0
        %1707 = vmatpush.msra.mxu0 0.0
        %1708 = vmatpush.msra.mxu0 0.0
        %1709 = vmatpush.msra.mxu0 0.0
        %1710 = vmatpush.msra.mxu0 0.0
        %1711 = vmatpush.msra.mxu0 0.0
        %1712 = vmatpush.msra.mxu0 0.0
        %1713 = vmatpush.msra.mxu0 0.0
        %1714 = vmatpush.msra.mxu0 0.0
        %1715 = vmatpush.msra.mxu0 0.0
        %1716 = vmatpush.msra.mxu0 0.0
        %1717 = vmatpush.msra.mxu0 0.0
        %1718 = vmatpush.msra.mxu0 %v1691
        %1719 = vmatpush.msra.mxu0 %v1690
        %1720 = vmatmul.f32.gmra.mxu0 %v1693
        %v1721 = vpop.f32.mrf.mxu0
        %v1722 = vadd.f32 0.0, %v1721
        %1723 = vmatmul.f32.gmra.mxu0 %v1696
        %v1724 = vpop.f32.mrf.mxu0
        %v1725 = vadd.f32 0.0, %v1724
        %1726 = vmatmul.f32.gmra.mxu0 %v1699
        %v1727 = vpop.f32.mrf.mxu0
        %v1728 = vadd.f32 0.0, %v1727
        %1729 = vmatmul.f32.gmra.mxu0 %v1702
        %v1730 = vpop.f32.mrf.mxu0
        %v1731 = vadd.f32 0.0, %v1730
        %1732 = vdwg.mxu0
        %v1733 = vadd.f32 %v1685, %v1722
        %v1734 = vadd.f32 %v1686, %v1725
        %v1735 = vadd.f32 %v1687, %v1728
        %v1736 = vadd.f32 %v1688, %v1731
        %v1737 = vadd.f32 %v1016, %v1733
        %v1738 = vadd.f32 %v1017, %v1734
        %v1739 = vadd.f32 %v1018, %v1735
        %v1740 = vadd.f32 %v1019, %v1736
        %v1741 = vld [vmem:[%s866] sm:$0x1]
        %v1742 = vld [vmem:[%s869] sm:$0x1]
        %v1743 = vsel %vm1028, %v1737, 0.0
        %1744 = vadd.xlane.f32.xlu0 %v1743
        %v1745 = vpop.xlane.xlu0 %1744
        %v1746 = vsel %vm1028, %v1738, 0.0
        %1747 = vadd.xlane.f32.xlu0 %v1746
        %v1748 = vpop.xlane.xlu0 %1747
        %v1749 = vsel %vm1028, %v1739, 0.0
        %1750 = vadd.xlane.f32.xlu0 %v1749
        %v1751 = vpop.xlane.xlu0 %1750
        %v1752 = vsel %vm1028, %v1740, 0.0
        %1753 = vadd.xlane.f32.xlu0 %v1752
        %v1754 = vpop.xlane.xlu0 %1753
        %v1755 = vrcp.pop 32.0
        %v1756 = vmul.f32 32.0, %v1755
        %v1757 = vsub.f32 1.0, %v1756
        %v1758 = vmul.f32 %v1755, %v1757
        %v1759 = vadd.f32 %v1755, %v1758
        %vm1760 = vweird.f32 %v1755
        %v1761 = vsel %vm1760, %v1755, %v1759
        %v1762 = vmul.f32 %v1745, %v1761
        %v1763 = vmul.f32 %v1748, %v1761
        %v1764 = vmul.f32 %v1751, %v1761
        %v1765 = vmul.f32 %v1754, %v1761
        %v1766 = vsub.f32 %v1737, %v1762
        %v1767 = vsub.f32 %v1738, %v1763
        %v1768 = vsub.f32 %v1739, %v1764
        %v1769 = vsub.f32 %v1740, %v1765
        %v1770 = vmul.f32 %v1766, %v1766
        %v1771 = vmul.f32 %v1767, %v1767
        %v1772 = vmul.f32 %v1768, %v1768
        %v1773 = vmul.f32 %v1769, %v1769
        %v1774 = vsel %vm1028, %v1770, 0.0
        %1775 = vadd.xlane.f32.xlu0 %v1774
        %v1776 = vpop.xlane.xlu0 %1775
        %v1777 = vsel %vm1028, %v1771, 0.0
        %1778 = vadd.xlane.f32.xlu0 %v1777
        %v1779 = vpop.xlane.xlu0 %1778
        %v1780 = vsel %vm1028, %v1772, 0.0
        %1781 = vadd.xlane.f32.xlu0 %v1780
        %v1782 = vpop.xlane.xlu0 %1781
        %v1783 = vsel %vm1028, %v1773, 0.0
        %1784 = vadd.xlane.f32.xlu0 %v1783
        %v1785 = vpop.xlane.xlu0 %1784
        %v1786 = vmul.f32 %v1776, %v1761
        %v1787 = vmul.f32 %v1779, %v1761
        %v1788 = vmul.f32 %v1782, %v1761
        %v1789 = vmul.f32 %v1785, %v1761
        %v1790 = vadd.f32 %v1786, 1e-12
        %v1791 = vadd.f32 %v1787, 1e-12
        %v1792 = vadd.f32 %v1788, 1e-12
        %v1793 = vadd.f32 %v1789, 1e-12
        %v1794 = vrsqrt.pop %v1790
        %v1795 = vmul.f32 %v1794, %v1790
        %v1796 = vmul.f32 %v1795, %v1794
        %v1797 = vmul.f32 0.5, %v1796
        %v1798 = vsub.f32 1.5, %v1797
        %v1799 = vmul.f32 %v1794, %v1798
        %vm1800 = vweird.f32 %v1790
        %vm1801 = vweird.f32 %v1794
        %vm1802 = vmor %vm1800, %vm1801
        %v1803 = vsel %vm1802, %v1794, %v1799
        %v1804 = vrsqrt.pop %v1791
        %v1805 = vmul.f32 %v1804, %v1791
        %v1806 = vmul.f32 %v1805, %v1804
        %v1807 = vmul.f32 0.5, %v1806
        %v1808 = vsub.f32 1.5, %v1807
        %v1809 = vmul.f32 %v1804, %v1808
        %vm1810 = vweird.f32 %v1791
        %vm1811 = vweird.f32 %v1804
        %vm1812 = vmor %vm1810, %vm1811
        %v1813 = vsel %vm1812, %v1804, %v1809
        %v1814 = vrsqrt.pop %v1792
        %v1815 = vmul.f32 %v1814, %v1792
        %v1816 = vmul.f32 %v1815, %v1814
        %v1817 = vmul.f32 0.5, %v1816
        %v1818 = vsub.f32 1.5, %v1817
        %v1819 = vmul.f32 %v1814, %v1818
        %vm1820 = vweird.f32 %v1792
        %vm1821 = vweird.f32 %v1814
        %vm1822 = vmor %vm1820, %vm1821
        %v1823 = vsel %vm1822, %v1814, %v1819
        %v1824 = vrsqrt.pop %v1793
        %v1825 = vmul.f32 %v1824, %v1793
        %v1826 = vmul.f32 %v1825, %v1824
        %v1827 = vmul.f32 0.5, %v1826
        %v1828 = vsub.f32 1.5, %v1827
        %v1829 = vmul.f32 %v1824, %v1828
        %vm1830 = vweird.f32 %v1793
        %vm1831 = vweird.f32 %v1824
        %vm1832 = vmor %vm1830, %vm1831
        %v1833 = vsel %vm1832, %v1824, %v1829
        %v1834 = vmul.f32 %v1766, %v1803
        %v1835 = vmul.f32 %v1767, %v1813
        %v1836 = vmul.f32 %v1768, %v1823
        %v1837 = vmul.f32 %v1769, %v1833
        %v1839 = vperm.slane %v1741, 0
        %v1841 = vmul.f32 %v1834, %v1839
        %v1842 = vmul.f32 %v1835, %v1839
        %v1843 = vmul.f32 %v1836, %v1839
        %v1844 = vmul.f32 %v1837, %v1839
        %v1846 = vperm.slane %v1742, 0
        %v1848 = vadd.f32 %v1841, %v1846
        %v1849 = vadd.f32 %v1842, %v1846
        %v1850 = vadd.f32 %v1843, %v1846
        %v1851 = vadd.f32 %v1844, %v1846
        %v1852 = vld [vmem:[%s874] sm:$0xff]
        %v1853 = vld [vmem:[%s874 + $0x8] sm:$0xff]
        %v1854 = vld [vmem:[%s874 + $0x10] sm:$0xff]
        %v1855 = vld [vmem:[%s874 + $0x18] sm:$0xff]
        %v1856 = vld [vmem:[%s877] sm:$0x1]
        %v1858 = vperm.slane %v1856, 0
        %v1861 = vsel %vm1028, %v1848, 0
        %v1864 = vsel %vm1028, %v1849, 0
        %v1867 = vsel %vm1028, %v1850, 0
        %v1870 = vsel %vm1028, %v1851, 0
        %1872 = vmatpush.msra.mxu0 0.0
        %1873 = vmatpush.msra.mxu0 0.0
        %1874 = vmatpush.msra.mxu0 0.0
        %1875 = vmatpush.msra.mxu0 0.0
        %1876 = vmatpush.msra.mxu0 0.0
        %1877 = vmatpush.msra.mxu0 0.0
        %1878 = vmatpush.msra.mxu0 0.0
        %1879 = vmatpush.msra.mxu0 0.0
        %1880 = vmatpush.msra.mxu0 0.0
        %1881 = vmatpush.msra.mxu0 0.0
        %1882 = vmatpush.msra.mxu0 0.0
        %1883 = vmatpush.msra.mxu0 0.0
        %1884 = vmatpush.msra.mxu0 %v1855
        %1885 = vmatpush.msra.mxu0 %v1854
        %1886 = vmatpush.msra.mxu0 %v1853
        %1887 = vmatpush.msra.mxu0 %v1852
        %1888 = vmatmul.f32.gmra.mxu0 %v1861
        %v1889 = vpop.f32.mrf.mxu0
        %v1890 = vadd.f32 %v1858, %v1889
        %1891 = vmatmul.f32.gmra.mxu0 %v1864
        %v1892 = vpop.f32.mrf.mxu0
        %v1893 = vadd.f32 %v1858, %v1892
        %1894 = vmatmul.f32.gmra.mxu0 %v1867
        %v1895 = vpop.f32.mrf.mxu0
        %v1896 = vadd.f32 %v1858, %v1895
        %1897 = vmatmul.f32.gmra.mxu0 %v1870
        %v1898 = vpop.f32.mrf.mxu0
        %v1899 = vadd.f32 %v1858, %v1898
        %1900 = vdwg.mxu0
        %v1901 = vmul.f32 %v1890, 0.5
        %v1902 = vmul.f32 %v1893, 0.5
        %v1903 = vmul.f32 %v1896, 0.5
        %v1904 = vmul.f32 %v1899, 0.5
        %v1905 = vmul.f32 %v1890, 0.044715
        %v1906 = vmul.f32 %v1893, 0.044715
        %v1907 = vmul.f32 %v1896, 0.044715
        %v1908 = vmul.f32 %v1899, 0.044715
        %v1909 = vmul.f32 %v1905, %v1890
        %v1910 = vmul.f32 %v1906, %v1893
        %v1911 = vmul.f32 %v1907, %v1896
        %v1912 = vmul.f32 %v1908, %v1899
        %v1913 = vmul.f32 %v1909, %v1890
        %v1914 = vmul.f32 %v1910, %v1893
        %v1915 = vmul.f32 %v1911, %v1896
        %v1916 = vmul.f32 %v1912, %v1899
        %v1917 = vadd.f32 %v1890, %v1913
        %v1918 = vadd.f32 %v1893, %v1914
        %v1919 = vadd.f32 %v1896, %v1915
        %v1920 = vadd.f32 %v1899, %v1916
        %v1921 = vmul.f32 %v1917, 0.7978846
        %v1922 = vmul.f32 %v1918, 0.7978846
        %v1923 = vmul.f32 %v1919, 0.7978846
        %v1924 = vmul.f32 %v1920, 0.7978846
        %v1925 = vtanh.pop %v1921
        %v1926 = vtanh.pop %v1922
        %v1927 = vtanh.pop %v1923
        %v1928 = vtanh.pop %v1924
        %v1929 = vadd.f32 %v1925, 1.0
        %v1930 = vadd.f32 %v1926, 1.0
        %v1931 = vadd.f32 %v1927, 1.0
        %v1932 = vadd.f32 %v1928, 1.0
        %v1933 = vmul.f32 %v1901, %v1929
        %v1934 = vmul.f32 %v1902, %v1930
        %v1935 = vmul.f32 %v1903, %v1931
        %v1936 = vmul.f32 %v1904, %v1932
        %v1937 = vld [vmem:[%s882] sm:$0xff]
        %v1938 = vld [vmem:[%s882 + $0x8] sm:$0xff]
        %v1939 = vld [vmem:[%s882 + $0x10] sm:$0xff]
        %v1940 = vld [vmem:[%s882 + $0x18] sm:$0xff]
        %v1941 = vld [vmem:[%s882 + $0x20] sm:$0xff]
        %v1942 = vld [vmem:[%s882 + $0x28] sm:$0xff]
        %v1943 = vld [vmem:[%s882 + $0x30] sm:$0xff]
        %v1944 = vld [vmem:[%s882 + $0x38] sm:$0xff]
        %v1945 = vld [vmem:[%s885] sm:$0x1]
        %v1947 = vperm.slane %v1945, 0
        %vm1949 = vcmask 523264
        %v1951 = vsel %vm1949, %v1933, 0
        %v1954 = vsel %vm1949, %v1934, 0
        %v1957 = vsel %vm1949, %v1935, 0
        %v1960 = vsel %vm1949, %v1936, 0
        %1962 = vmatpush.msra.mxu0 0.0
        %1963 = vmatpush.msra.mxu0 0.0
        %1964 = vmatpush.msra.mxu0 0.0
        %1965 = vmatpush.msra.mxu0 0.0
        %1966 = vmatpush.msra.mxu0 0.0
        %1967 = vmatpush.msra.mxu0 0.0
        %1968 = vmatpush.msra.mxu0 0.0
        %1969 = vmatpush.msra.mxu0 0.0
        %1970 = vmatpush.msra.mxu0 %v1944
        %1971 = vmatpush.msra.mxu0 %v1943
        %1972 = vmatpush.msra.mxu0 %v1942
        %1973 = vmatpush.msra.mxu0 %v1941
        %1974 = vmatpush.msra.mxu0 %v1940
        %1975 = vmatpush.msra.mxu0 %v1939
        %1976 = vmatpush.msra.mxu0 %v1938
        %1977 = vmatpush.msra.mxu0 %v1937
        %1978 = vmatmul.f32.gmra.mxu0 %v1951
        %v1979 = vpop.f32.mrf.mxu0
        %v1980 = vadd.f32 %v1947, %v1979
        %1981 = vmatmul.f32.gmra.mxu0 %v1954
        %v1982 = vpop.f32.mrf.mxu0
        %v1983 = vadd.f32 %v1947, %v1982
        %1984 = vmatmul.f32.gmra.mxu0 %v1957
        %v1985 = vpop.f32.mrf.mxu0
        %v1986 = vadd.f32 %v1947, %v1985
        %1987 = vmatmul.f32.gmra.mxu0 %v1960
        %v1988 = vpop.f32.mrf.mxu0
        %v1989 = vadd.f32 %v1947, %v1988
        %1990 = vdwg.mxu0
        %v1991 = vadd.f32 %v1848, %v1980
        %v1992 = vadd.f32 %v1849, %v1983
        %v1993 = vadd.f32 %v1850, %v1986
        %v1994 = vadd.f32 %v1851, %v1989
        %v1995 = vld [vmem:[%s888] sm:$0x1]
        %v1996 = vld [vmem:[%s891] sm:$0x1]
        %v1997 = vsel %vm1028, %v1991, 0.0
        %1998 = vadd.xlane.f32.xlu0 %v1997
        %v1999 = vpop.xlane.xlu0 %1998
        %v2000 = vsel %vm1028, %v1992, 0.0
        %2001 = vadd.xlane.f32.xlu0 %v2000
        %v2002 = vpop.xlane.xlu0 %2001
        %v2003 = vsel %vm1028, %v1993, 0.0
        %2004 = vadd.xlane.f32.xlu0 %v2003
        %v2005 = vpop.xlane.xlu0 %2004
        %v2006 = vsel %vm1028, %v1994, 0.0
        %2007 = vadd.xlane.f32.xlu0 %v2006
        %v2008 = vpop.xlane.xlu0 %2007
        %v2009 = vmul.f32 %v1999, %v1761
        %v2010 = vmul.f32 %v2002, %v1761
        %v2011 = vmul.f32 %v2005, %v1761
        %v2012 = vmul.f32 %v2008, %v1761
        %v2013 = vsub.f32 %v1991, %v2009
        %v2014 = vsub.f32 %v1992, %v2010
        %v2015 = vsub.f32 %v1993, %v2011
        %v2016 = vsub.f32 %v1994, %v2012
        %v2017 = vmul.f32 %v2013, %v2013
        %v2018 = vmul.f32 %v2014, %v2014
        %v2019 = vmul.f32 %v2015, %v2015
        %v2020 = vmul.f32 %v2016, %v2016
        %v2021 = vsel %vm1028, %v2017, 0.0
        %2022 = vadd.xlane.f32.xlu0 %v2021
        %v2023 = vpop.xlane.xlu0 %2022
        %v2024 = vsel %vm1028, %v2018, 0.0
        %2025 = vadd.xlane.f32.xlu0 %v2024
        %v2026 = vpop.xlane.xlu0 %2025
        %v2027 = vsel %vm1028, %v2019, 0.0
        %2028 = vadd.xlane.f32.xlu0 %v2027
        %v2029 = vpop.xlane.xlu0 %2028
        %v2030 = vsel %vm1028, %v2020, 0.0
        %2031 = vadd.xlane.f32.xlu0 %v2030
        %v2032 = vpop.xlane.xlu0 %2031
        %v2033 = vmul.f32 %v2023, %v1761
        %v2034 = vmul.f32 %v2026, %v1761
        %v2035 = vmul.f32 %v2029, %v1761
        %v2036 = vmul.f32 %v2032, %v1761
        %v2037 = vadd.f32 %v2033, 1e-12
        %v2038 = vadd.f32 %v2034, 1e-12
        %v2039 = vadd.f32 %v2035, 1e-12
        %v2040 = vadd.f32 %v2036, 1e-12
        %v2041 = vrsqrt.pop %v2037
        %v2042 = vmul.f32 %v2041, %v2037
        %v2043 = vmul.f32 %v2042, %v2041
        %v2044 = vmul.f32 0.5, %v2043
        %v2045 = vsub.f32 1.5, %v2044
        %v2046 = vmul.f32 %v2041, %v2045
        %vm2047 = vweird.f32 %v2037
        %vm2048 = vweird.f32 %v2041
        %vm2049 = vmor %vm2047, %vm2048
        %v2050 = vsel %vm2049, %v2041, %v2046
        %v2051 = vrsqrt.pop %v2038
        %v2052 = vmul.f32 %v2051, %v2038
        %v2053 = vmul.f32 %v2052, %v2051
        %v2054 = vmul.f32 0.5, %v2053
        %v2055 = vsub.f32 1.5, %v2054
        %v2056 = vmul.f32 %v2051, %v2055
        %vm2057 = vweird.f32 %v2038
        %vm2058 = vweird.f32 %v2051
        %vm2059 = vmor %vm2057, %vm2058
        %v2060 = vsel %vm2059, %v2051, %v2056
        %v2061 = vrsqrt.pop %v2039
        %v2062 = vmul.f32 %v2061, %v2039
        %v2063 = vmul.f32 %v2062, %v2061
        %v2064 = vmul.f32 0.5, %v2063
        %v2065 = vsub.f32 1.5, %v2064
        %v2066 = vmul.f32 %v2061, %v2065
        %vm2067 = vweird.f32 %v2039
        %vm2068 = vweird.f32 %v2061
        %vm2069 = vmor %vm2067, %vm2068
        %v2070 = vsel %vm2069, %v2061, %v2066
        %v2071 = vrsqrt.pop %v2040
        %v2072 = vmul.f32 %v2071, %v2040
        %v2073 = vmul.f32 %v2072, %v2071
        %v2074 = vmul.f32 0.5, %v2073
        %v2075 = vsub.f32 1.5, %v2074
        %v2076 = vmul.f32 %v2071, %v2075
        %vm2077 = vweird.f32 %v2040
        %vm2078 = vweird.f32 %v2071
        %vm2079 = vmor %vm2077, %vm2078
        %v2080 = vsel %vm2079, %v2071, %v2076
        %v2081 = vmul.f32 %v2013, %v2050
        %v2082 = vmul.f32 %v2014, %v2060
        %v2083 = vmul.f32 %v2015, %v2070
        %v2084 = vmul.f32 %v2016, %v2080
        %v2086 = vperm.slane %v1995, 0
        %v2088 = vmul.f32 %v2081, %v2086
        %v2089 = vmul.f32 %v2082, %v2086
        %v2090 = vmul.f32 %v2083, %v2086
        %v2091 = vmul.f32 %v2084, %v2086
        %v2093 = vperm.slane %v1996, 0
        %v2095 = vadd.f32 %v2088, %v2093
        %v2096 = vadd.f32 %v2089, %v2093
        %v2097 = vadd.f32 %v2090, %v2093
        %v2098 = vadd.f32 %v2091, %v2093
        %2099 = vst.msk [vmem:[#allocation2] sm:$0xff] %vm1028, %v2095
        %2100 = vst.msk [vmem:[#allocation2 + $0x8] sm:$0xff] %vm1028, %v2096
        %2101 = vst.msk [vmem:[#allocation2 + $0x10] sm:$0xff] %vm1028, %v2097
        %2102 = vst.msk [vmem:[#allocation2 + $0x18] sm:$0xff] %vm1028, %v2098
        %p2103 = scmp.eq.s32.totalorder %s33, 1
        // Predicated region
        $region109: #{tpu_custom_call.1} parent=103 // pred_check
          %p2104 = pneg %p2103
        $region110: #{tpu_custom_call.1} parent=103 // pred_check_branch
          %2106 = sbr.rel (%p2104) target = $region112
        $region111: #{tpu_custom_call.1} parent=103 // pred_region
          %v2107 = vld [vmem:[%s2] sm:$0xff]
          %v2108 = vld [vmem:[%s2 + $0x8] sm:$0xff]
          %v2109 = vld [vmem:[%s2 + $0x10] sm:$0xff]
          %v2110 = vld [vmem:[%s2 + $0x18] sm:$0xff]
          %s2111 = scalar_lea.vmem %s2, 32
          %v2112 = vld [vmem:[%s2111] sm:$0xff]
          %v2113 = vld [vmem:[%s2111 + $0x8] sm:$0xff]
          %v2114 = vld [vmem:[%s2111 + $0x10] sm:$0xff]
          %v2115 = vld [vmem:[%s2111 + $0x18] sm:$0xff]
          %v2117 = vsel %vm1028, %v2096, 0
          %2119 = vmatpush.msra.mxu0 0.0
          %2120 = vmatpush.msra.mxu0 0.0
          %2121 = vmatpush.msra.mxu0 0.0
          %2122 = vmatpush.msra.mxu0 0.0
          %2123 = vmatpush.msra.mxu0 0.0
          %2124 = vmatpush.msra.mxu0 0.0
          %2125 = vmatpush.msra.mxu0 0.0
          %2126 = vmatpush.msra.mxu0 0.0
          %2127 = vmatpush.msra.mxu0 0.0
          %2128 = vmatpush.msra.mxu0 0.0
          %2129 = vmatpush.msra.mxu0 0.0
          %2130 = vmatpush.msra.mxu0 0.0
          %2131 = vmatpush.msra.mxu0 %v2115
          %2132 = vmatpush.msra.mxu0 %v2114
          %2133 = vmatpush.msra.mxu0 %v2113
          %2134 = vmatpush.msra.mxu0 %v2112
          %2135 = vmatmul.f32.gmra.mxu0 %v2117
          %v2136 = vpop.f32.mrf.mxu0
          %v2137 = vadd.f32 0.0, %v2136
          %2138 = vdwg.mxu0
          %v2140 = vsel %vm1028, %v2095, 0
          %2142 = vmatpush.msra.mxu0 0.0
          %2143 = vmatpush.msra.mxu0 0.0
          %2144 = vmatpush.msra.mxu0 0.0
          %2145 = vmatpush.msra.mxu0 0.0
          %2146 = vmatpush.msra.mxu0 0.0
          %2147 = vmatpush.msra.mxu0 0.0
          %2148 = vmatpush.msra.mxu0 0.0
          %2149 = vmatpush.msra.mxu0 0.0
          %2150 = vmatpush.msra.mxu0 0.0
          %2151 = vmatpush.msra.mxu0 0.0
          %2152 = vmatpush.msra.mxu0 0.0
          %2153 = vmatpush.msra.mxu0 0.0
          %2154 = vmatpush.msra.mxu0 %v2110
          %2155 = vmatpush.msra.mxu0 %v2109
          %2156 = vmatpush.msra.mxu0 %v2108
          %2157 = vmatpush.msra.mxu0 %v2107
          %2158 = vmatmul.f32.gmra.mxu0 %v2140
          %v2159 = vpop.f32.mrf.mxu0
          %v2160 = vadd.f32 %v2137, %v2159
          %2161 = vdwg.mxu0
          %s2162 = scalar_lea.vmem %s2, 64
          %v2163 = vld [vmem:[%s2162] sm:$0xff]
          %v2164 = vld [vmem:[%s2162 + $0x8] sm:$0xff]
          %v2165 = vld [vmem:[%s2162 + $0x10] sm:$0xff]
          %v2166 = vld [vmem:[%s2162 + $0x18] sm:$0xff]
          %v2168 = vsel %vm1028, %v2097, 0
          %2170 = vmatpush.msra.mxu0 0.0
          %2171 = vmatpush.msra.mxu0 0.0
          %2172 = vmatpush.msra.mxu0 0.0
          %2173 = vmatpush.msra.mxu0 0.0
          %2174 = vmatpush.msra.mxu0 0.0
          %2175 = vmatpush.msra.mxu0 0.0
          %2176 = vmatpush.msra.mxu0 0.0
          %2177 = vmatpush.msra.mxu0 0.0
          %2178 = vmatpush.msra.mxu0 0.0
          %2179 = vmatpush.msra.mxu0 0.0
          %2180 = vmatpush.msra.mxu0 0.0
          %2181 = vmatpush.msra.mxu0 0.0
          %2182 = vmatpush.msra.mxu0 %v2166
          %2183 = vmatpush.msra.mxu0 %v2165
          %2184 = vmatpush.msra.mxu0 %v2164
          %2185 = vmatpush.msra.mxu0 %v2163
          %2186 = vmatmul.f32.gmra.mxu0 %v2168
          %v2187 = vpop.f32.mrf.mxu0
          %v2188 = vadd.f32 0.0, %v2187
          %2189 = vdwg.mxu0
          %v2190 = vadd.f32 %v2160, %v2188
          %s2191 = scalar_lea.vmem %s2, 96
          %v2192 = vld [vmem:[%s2191] sm:$0xff]
          %v2193 = vld [vmem:[%s2191 + $0x8] sm:$0xff]
          %v2194 = vld [vmem:[%s2191 + $0x10] sm:$0xff]
          %v2195 = vld [vmem:[%s2191 + $0x18] sm:$0xff]
          %v2197 = vsel %vm1028, %v2098, 0
          %2199 = vmatpush.msra.mxu0 0.0
          %2200 = vmatpush.msra.mxu0 0.0
          %2201 = vmatpush.msra.mxu0 0.0
          %2202 = vmatpush.msra.mxu0 0.0
          %2203 = vmatpush.msra.mxu0 0.0
          %2204 = vmatpush.msra.mxu0 0.0
          %2205 = vmatpush.msra.mxu0 0.0
          %2206 = vmatpush.msra.mxu0 0.0
          %2207 = vmatpush.msra.mxu0 0.0
          %2208 = vmatpush.msra.mxu0 0.0
          %2209 = vmatpush.msra.mxu0 0.0
          %2210 = vmatpush.msra.mxu0 0.0
          %2211 = vmatpush.msra.mxu0 %v2195
          %2212 = vmatpush.msra.mxu0 %v2194
          %2213 = vmatpush.msra.mxu0 %v2193
          %2214 = vmatpush.msra.mxu0 %v2192
          %2215 = vmatmul.f32.gmra.mxu0 %v2197
          %v2216 = vpop.f32.mrf.mxu0
          %v2217 = vadd.f32 0.0, %v2216
          %2218 = vdwg.mxu0
          %v2219 = vadd.f32 %v2190, %v2217
          %2220 = vst [vmem:[#allocation3] sm:$0xff] %v2219
        $region112: #{tpu_custom_call.1} parent=103 // pred_fallthru
          _
        // Predicated region
        $region113: #{tpu_custom_call.1} parent=103 // pred_check
          %p2221 = pneg %p567
        $region114: #{tpu_custom_call.1} parent=103 // pred_check_branch
          %2223 = sbr.rel (%p2221) target = $region116
        $region115: #{tpu_custom_call.1} parent=103 // pred_region
          %2225 = vsyncadd [#allocation4], 0
          %s2227 = sshll.u32 [#allocation3], 4
          %s2228 = int_to_ptr.vmem [resolvable:$true] %s2227
          %s2229 = sshll.u32 %s21, 4
          %s2230 = int_to_ptr.hbm [resolvable:$true] %s2229
          %2232 = dma.vmem_to_hbm [thread:$0]  %s2228, 128, %s2230, [#allocation4]
        $region116: #{tpu_custom_call.1} parent=103 // pred_fallthru
          _
        // Predicated region
        $region117: #{tpu_custom_call.1} parent=103 // pred_check
          %p2233 = pneg %p567
        $region118: #{tpu_custom_call.1} parent=103 // pred_check_branch
          %2235 = sbr.rel (%p2233) target = $region120
        $region119: #{tpu_custom_call.1} parent=103 // pred_region
          %2237 = dma.done [#allocation4], 128
        $region120: #{tpu_custom_call.1} parent=103 // pred_fallthru
          _
      $region104: #{tpu_custom_call.1} parent=5 // pred_fallthru
        _
      %p2238 = scmp.le.s32.totalorder 2, %s28
      // Predicated region
      $region121: #{tpu_custom_call.1} parent=5 // pred_check
        %p2239 = pneg %p2238
      $region122: #{tpu_custom_call.1} parent=5 // pred_check_branch
        %2241 = sbr.rel (%p2239) target = $region124
      $region123: #{tpu_custom_call.1} parent=5 // pred_region
        %s2242 = ssub.s32 %s28, 2
      $region124: #{tpu_custom_call.1} parent=5 // pred_fallthru
        _
    $region6: #{tpu_custom_call.1} parent=1 // loop_footer
      %s32 = sadd.s32 1, %s28
    $region7: #{tpu_custom_call.1} parent=1 // loop_footer_branch
      %27 = sbr.rel target = $region3
    $region8: #{tpu_custom_call.1} parent=1 // loop_exit
      _
    %2243 = vsyncpa [#allocation4], 1
    %s2244 = scalar_lea.sflag [#allocation4], 1
    %2245 = vsyncpa %s2244, 1

</llo_original>
